<compile_context>
chip_gen: v7x
topology: tpu7x:2x2x1
jax: 0.10.0
libtpu: 0.0.40
codegen_flags: <defaults>
</compile_context>

<pallas_src>
from functools import partial

import jax
import jax.numpy as jnp
from jax.experimental import pallas as pl
from jax.experimental.pallas import tpu as pltpu


def _round_up(x: int, m: int) -> int:
    return (x + m - 1) // m * m


def ff_kernel(x_ref, w1_ref, b1_ref, w2_ref, b2_ref, w3_ref, b3_ref,
              w3t_ref, b3t_ref, logits_ref, conf_ref, *, n_classes):
    """One batch tile of the fused MLP + max_prob confidence.

    Matmul operands are cast to the compute dtype (bf16 by default) in-kernel;
    accumulation, biases, ReLU and the softmax/confidence math are all f32.
    """
    cdt = w1_ref.dtype  # compute dtype for MXU operands (bf16 or f32)

    # --- initial_layers: linear1 -> relu -> (dropout=id) -> linear2 -> relu -> (dropout=id)
    x = x_ref[...].astype(cdt)                                            # (bm, in_dim)
    h1 = jnp.dot(x, w1_ref[...], preferred_element_type=jnp.float32) + b1_ref[...]
    h1 = jnp.maximum(h1, 0.0).astype(cdt)                                 # (bm, h1)
    h2 = jnp.dot(h1, w2_ref[...], preferred_element_type=jnp.float32) + b2_ref[...]
    h2 = jnp.maximum(h2, 0.0).astype(cdt)                                 # (bm, h2)

    # --- final linear: lane-dense (bm, 128) logits store (padded cols have zero weights).
    logits = jnp.dot(h2, w3_ref[...], preferred_element_type=jnp.float32) + b3_ref[...]
    logits_ref[...] = logits.astype(logits_ref.dtype)

    # --- confidence_extractor = max_prob:
    #       conf = max softmax(clamp(logits, -25, 25)) = 1 / sum_j exp(clamped_j - max_j)
    # Computed on a transposed logits copy (classes on sublanes, batch on lanes) so the
    # per-row confidence naturally lands batch-on-lanes -> unmasked (1, bm) store.
    logits_t = jax.lax.dot_general(                                        # (n_pad, bm)
        w3t_ref[...], h2, (((1,), (1,)), ((), ())),
        preferred_element_type=jnp.float32) + b3t_ref[...]
    n_pad_k, bm_k = logits_t.shape
    clamped = jnp.clip(logits_t, -25.0, 25.0)
    row = jax.lax.broadcasted_iota(jnp.int32, (n_pad_k, bm_k), 0)
    clamped = jnp.where(row < n_classes, clamped, -1e30)   # padded classes -> exp() == 0
    m = jnp.max(clamped, axis=0, keepdims=True)                            # (1, bm)
    denom = jnp.sum(jnp.exp(clamped - m), axis=0, keepdims=True)           # (1, bm)
    conf_ref[...] = pl.reciprocal(denom, approx=False).astype(conf_ref.dtype)


def feedforward_pallas(x, params, *, bm=256, cast_to_bf16=True):
    """Fused MLP forward + max_prob confidence.

    x: (B, input_size) float32. Returns (logits (B, n_classes) f32, confidence (B,) f32).
    """
    w1, b1, w2, b2, w3, b3 = params
    B, in_dim = x.shape
    n_classes = w3.shape[1]

    # --- parameter prep (tiny; weights total ~0.25 MB in bf16)
    b1 = b1.reshape(1, -1).astype(jnp.float32)
    b2 = b2.reshape(1, -1).astype(jnp.float32)
    b3 = b3.reshape(1, -1).astype(jnp.float32)

    # Pad the classifier to a lane-dense 128-wide output.
    n_pad = _round_up(max(n_classes, 128), 128)
    w3p = jnp.zeros((w3.shape[0], n_pad), w3.dtype).at[:, :n_classes].set(w3)
    b3p = jnp.zeros((1, n_pad), jnp.float32).at[:, :n_classes].set(b3)
    w3t = w3p.T                               # (n_pad, hidden2) for the transposed matmul
    b3t = b3p.T                               # (n_pad, 1)

    # Only weights are cast in the wrapper; x is cast in-kernel (no extra HBM pass).
    cdt = jnp.bfloat16 if cast_to_bf16 else x.dtype
    w1c, w2c, w3c, w3tc = (w.astype(cdt) for w in (w1, w2, w3p, w3t))

    # --- batch tiling: large tiles, arbitrary B via zero-padding (ragged case only).
    bm = max(128, min((int(bm) // 128) * 128, _round_up(B, 128)))
    B_pad = _round_up(B, bm)
    xp = jnp.pad(x, ((0, B_pad - B), (0, 0))) if B_pad != B else x
    n_tiles = B_pad // bm

    logits_pad, conf_pad = pl.pallas_call(
        partial(ff_kernel, n_classes=n_classes),
        out_shape=(
            jax.ShapeDtypeStruct((B_pad, n_pad), jnp.float32),
            jax.ShapeDtypeStruct((1, B_pad), jnp.float32),
        ),
        grid_spec=pltpu.PrefetchScalarGridSpec(
            num_scalar_prefetch=0,
            grid=(n_tiles,),
            in_specs=[
                pl.BlockSpec((bm, in_dim), lambda i: (i, 0)),   # x tile (streamed, orig dtype)
                pl.BlockSpec(w1c.shape, lambda i: (0, 0)),      # W1 (resident)
                pl.BlockSpec(b1.shape, lambda i: (0, 0)),       # b1
                pl.BlockSpec(w2c.shape, lambda i: (0, 0)),      # W2
                pl.BlockSpec(b2.shape, lambda i: (0, 0)),       # b2
                pl.BlockSpec(w3c.shape, lambda i: (0, 0)),      # W3 (padded to 128 cols)
                pl.BlockSpec(b3p.shape, lambda i: (0, 0)),      # b3 (padded)
                pl.BlockSpec(w3tc.shape, lambda i: (0, 0)),     # W3^T (for conf matmul)
                pl.BlockSpec(b3t.shape, lambda i: (0, 0)),      # b3^T
            ],
            out_specs=[
                pl.BlockSpec((bm, n_pad), lambda i: (i, 0)),    # logits, lane-dense
                pl.BlockSpec((1, bm), lambda i: (0, i)),        # confidence, batch on lanes
            ],
        ),
        compiler_params=pltpu.CompilerParams(
            dimension_semantics=("parallel",),       # shard tiles across v7x's 2 TCs
            vmem_limit_bytes=32 * 1024 * 1024,       # headroom if bm is pushed high (v5e)
        ),
    )(xp, w1c, b1, w2c, b2, w3c, b3p, w3tc, b3t)

    return logits_pad[:B, :n_classes], conf_pad[0, :B]


def init_params(key, input_size=784, hidden_sizes=(128, 64), output_size=10):
    """PyTorch-Linear-style init: U(-1/sqrt(fan_in), 1/sqrt(fan_in)); W stored (in, out)."""
    dims = [input_size, hidden_sizes[0], hidden_sizes[1], output_size]
    params = []
    for fan_in, fan_out in zip(dims[:-1], dims[1:]):
        key, kw, kb = jax.random.split(key, 3)
        bound = 1.0 / (fan_in ** 0.5)
        w = jax.random.uniform(kw, (fan_in, fan_out), jnp.float32, -bound, bound)
        b = jax.random.uniform(kb, (1, fan_out), jnp.float32, -bound, bound)
        params += [w, b]
    return tuple(params)


def feedforward_ref(x, params, *, cast_to_bf16=False):
    """Pure-JAX reference (eval-mode dropout), optionally with bf16 matmul operands."""
    w1, b1, w2, b2, w3, b3 = params
    cdt = jnp.bfloat16 if cast_to_bf16 else x.dtype

    def dot(a, w):
        return jnp.dot(a.astype(cdt), w.astype(cdt), preferred_element_type=jnp.float32)

    b1, b2, b3 = (b.reshape(1, -1) for b in (b1, b2, b3))
    h1 = jnp.maximum(dot(x, w1) + b1, 0.0)
    h2 = jnp.maximum(dot(h1, w2) + b2, 0.0)
    logits = dot(h2, w3) + b3
    probs = jax.nn.softmax(jnp.clip(logits, -25.0, 25.0), axis=-1)
    return logits, jnp.max(probs, axis=1)


if __name__ == "__main__":
    key = jax.random.PRNGKey(0)
    kp, kx = jax.random.split(key)

    INPUT_SIZE, HIDDEN, OUTPUT = 784, (128, 64), 10
    B = 300                                   # deliberately NOT a multiple of the tile
    params = init_params(kp, INPUT_SIZE, HIDDEN, OUTPUT)
    x = jax.random.normal(kx, (B, INPUT_SIZE), jnp.float32)

    # --- exact f32 path: matches the PyTorch module's numerics.
    logits32, conf32 = jax.block_until_ready(
        feedforward_pallas(x, params, bm=128, cast_to_bf16=False))
    ref_logits32, ref_conf32 = feedforward_ref(x, params, cast_to_bf16=False)
    assert logits32.shape == (B, OUTPUT) and conf32.shape == (B,)
    assert jnp.allclose(logits32, ref_logits32, atol=1e-4, rtol=1e-4)
    assert jnp.allclose(conf32, ref_conf32, atol=2e-5, rtol=1e-4)

    # --- default fast path: bf16 matmul operands, f32 accumulate + elementwise.
    logits_bf, conf_bf = jax.block_until_ready(feedforward_pallas(x, params))
    ref_logits_bf, ref_conf_bf = feedforward_ref(x, params, cast_to_bf16=True)
    assert logits_bf.shape == (B, OUTPUT) and conf_bf.shape == (B,)
    assert jnp.allclose(logits_bf, ref_logits_bf, atol=1e-2, rtol=1e-2)
    assert jnp.allclose(conf_bf, ref_conf_bf, atol=5e-3, rtol=1e-2)

    print("KERNEL_OK")
</pallas_src>

<mosaic_0001>
module attributes {stable_mosaic.version = 11 : i64} {
  func.func @ff_kernel(%arg0: i32, %arg1: memref<128x784xf32, #tpu.memory_space<vmem>>, %arg2: memref<784x128xf32, #tpu.memory_space<vmem>>, %arg3: memref<1x128xf32, #tpu.memory_space<vmem>>, %arg4: memref<128x64xf32, #tpu.memory_space<vmem>>, %arg5: memref<1x64xf32, #tpu.memory_space<vmem>>, %arg6: memref<64x128xf32, #tpu.memory_space<vmem>>, %arg7: memref<1x128xf32, #tpu.memory_space<vmem>>, %arg8: memref<128x64xf32, #tpu.memory_space<vmem>>, %arg9: memref<128x1xf32, #tpu.memory_space<vmem>>, %arg10: memref<128x128xf32, #tpu.memory_space<vmem>>, %arg11: memref<1x128xf32, #tpu.memory_space<vmem>>) attributes {dimension_semantics = [#tpu.dimension_semantics<parallel>], iteration_bounds = array<i64: 3>, scalar_prefetch = 0 : i64, scratch_operands = 0 : i64, tpu.core_type = #tpu.core_type<tc>, window_params = [{transform_indices = @transform_0, window_bounds = array<i64: 128, 784>}, {pipeline_mode = #tpu.pipeline_mode<synchronous>, transform_indices = @transform_1, window_bounds = array<i64: 784, 128>}, {pipeline_mode = #tpu.pipeline_mode<synchronous>, transform_indices = @transform_2, window_bounds = array<i64: 1, 128>}, {pipeline_mode = #tpu.pipeline_mode<synchronous>, transform_indices = @transform_3, window_bounds = array<i64: 128, 64>}, {pipeline_mode = #tpu.pipeline_mode<synchronous>, transform_indices = @transform_4, window_bounds = array<i64: 1, 64>}, {pipeline_mode = #tpu.pipeline_mode<synchronous>, transform_indices = @transform_5, window_bounds = array<i64: 64, 128>}, {pipeline_mode = #tpu.pipeline_mode<synchronous>, transform_indices = @transform_6, window_bounds = array<i64: 1, 128>}, {pipeline_mode = #tpu.pipeline_mode<synchronous>, transform_indices = @transform_7, window_bounds = array<i64: 128, 64>}, {pipeline_mode = #tpu.pipeline_mode<synchronous>, transform_indices = @transform_8, window_bounds = array<i64: 128, 1>}, {transform_indices = @transform_9, window_bounds = array<i64: 128, 128>}, {transform_indices = @transform_10, window_bounds = array<i64: 1, 128>}]} {
    %c0 = arith.constant 0 : index
    %c0_0 = arith.constant 0 : index
    %0 = vector.load %arg1[%c0, %c0_0] : memref<128x784xf32, #tpu.memory_space<vmem>>, vector<128x784xf32>
    %c0_1 = arith.constant 0 : index
    %c0_2 = arith.constant 0 : index
    %1 = vector.load %arg2[%c0_1, %c0_2] : memref<784x128xf32, #tpu.memory_space<vmem>>, vector<784x128xf32>
    %cst = arith.constant dense<0.000000e+00> : vector<128x128xf32>
    %2 = tpu.matmul %0, %1, %cst {dimension_numbers = #tpu.dot_dimension_numbers<[1], [0], [0], [1], [0, 0, 1, 1], [], []>} : vector<128x784xf32>, vector<784x128xf32>, vector<128x128xf32> -> vector<128x128xf32>
    %c0_3 = arith.constant 0 : index
    %c0_4 = arith.constant 0 : index
    %3 = vector.load %arg3[%c0_3, %c0_4] : memref<1x128xf32, #tpu.memory_space<vmem>>, vector<1x128xf32>
    %4 = vector.broadcast %3 : vector<1x128xf32> to vector<128x128xf32>
    %5 = arith.addf %2, %4 : vector<128x128xf32>
    %cst_5 = arith.constant 0.000000e+00 : f32
    %6 = vector.broadcast %cst_5 : f32 to vector<128x128xf32>
    %7 = arith.maximumf %5, %6 : vector<128x128xf32>
    %c0_6 = arith.constant 0 : index
    %c0_7 = arith.constant 0 : index
    %8 = vector.load %arg4[%c0_6, %c0_7] : memref<128x64xf32, #tpu.memory_space<vmem>>, vector<128x64xf32>
    %cst_8 = arith.constant dense<0.000000e+00> : vector<128x64xf32>
    %9 = tpu.matmul %7, %8, %cst_8 {dimension_numbers = #tpu.dot_dimension_numbers<[1], [0], [0], [1], [0, 0, 1, 1], [], []>} : vector<128x128xf32>, vector<128x64xf32>, vector<128x64xf32> -> vector<128x64xf32>
    %c0_9 = arith.constant 0 : index
    %c0_10 = arith.constant 0 : index
    %10 = vector.load %arg5[%c0_9, %c0_10] : memref<1x64xf32, #tpu.memory_space<vmem>>, vector<1x64xf32>
    %11 = vector.broadcast %10 : vector<1x64xf32> to vector<128x64xf32>
    %12 = arith.addf %9, %11 : vector<128x64xf32>
    %cst_11 = arith.constant 0.000000e+00 : f32
    %13 = vector.broadcast %cst_11 : f32 to vector<128x64xf32>
    %14 = arith.maximumf %12, %13 : vector<128x64xf32>
    %c0_12 = arith.constant 0 : index
    %c0_13 = arith.constant 0 : index
    %15 = vector.load %arg6[%c0_12, %c0_13] : memref<64x128xf32, #tpu.memory_space<vmem>>, vector<64x128xf32>
    %cst_14 = arith.constant dense<0.000000e+00> : vector<128x128xf32>
    %16 = tpu.matmul %14, %15, %cst_14 {dimension_numbers = #tpu.dot_dimension_numbers<[1], [0], [0], [1], [0, 0, 1, 1], [], []>} : vector<128x64xf32>, vector<64x128xf32>, vector<128x128xf32> -> vector<128x128xf32>
    %c0_15 = arith.constant 0 : index
    %c0_16 = arith.constant 0 : index
    %17 = vector.load %arg7[%c0_15, %c0_16] : memref<1x128xf32, #tpu.memory_space<vmem>>, vector<1x128xf32>
    %18 = vector.broadcast %17 : vector<1x128xf32> to vector<128x128xf32>
    %19 = arith.addf %16, %18 : vector<128x128xf32>
    %c0_17 = arith.constant 0 : index
    %c0_18 = arith.constant 0 : index
    %20 = vector.load %arg10[%c0_17, %c0_18] : memref<128x128xf32, #tpu.memory_space<vmem>>, vector<128x128xf32>
    tpu.vector_store %arg10[%c0_17, %c0_18], %19 {strides = array<i32>} : memref<128x128xf32, #tpu.memory_space<vmem>>, vector<128x128xf32>,
    %c0_19 = arith.constant 0 : index
    %c0_20 = arith.constant 0 : index
    %21 = vector.load %arg8[%c0_19, %c0_20] : memref<128x64xf32, #tpu.memory_space<vmem>>, vector<128x64xf32>
    %cst_21 = arith.constant dense<0.000000e+00> : vector<128x128xf32>
    %22 = tpu.matmul %21, %14, %cst_21 {dimension_numbers = #tpu.dot_dimension_numbers<[1], [1], [0], [0], [0, 0, 1, 0], [], []>} : vector<128x64xf32>, vector<128x64xf32>, vector<128x128xf32> -> vector<128x128xf32>
    %c0_22 = arith.constant 0 : index
    %c0_23 = arith.constant 0 : index
    %23 = vector.load %arg9[%c0_22, %c0_23] : memref<128x1xf32, #tpu.memory_space<vmem>>, vector<128x1xf32>
    %24 = vector.broadcast %23 : vector<128x1xf32> to vector<128x128xf32>
    %25 = arith.addf %22, %24 : vector<128x128xf32>
    %cst_24 = arith.constant -2.500000e+01 : f32
    %cst_25 = arith.constant 2.500000e+01 : f32
    %26 = vector.broadcast %cst_24 : f32 to vector<128x128xf32>
    %27 = arith.maximumf %26, %25 : vector<128x128xf32>
    %28 = vector.broadcast %cst_25 : f32 to vector<128x128xf32>
    %29 = arith.minimumf %28, %27 : vector<128x128xf32>
    %30 = tpu.iota {dimensions = array<i32: 0>} : vector<128x128xi32>
    %c10_i32 = arith.constant 10 : i32
    %31 = vector.broadcast %c10_i32 : i32 to vector<128x128xi32>
    %32 = arith.cmpi slt, %30, %31 : vector<128x128xi32>
    %cst_26 = arith.constant -1.000000e+30 : f32
    %33 = vector.broadcast %cst_26 : f32 to vector<128x128xf32>
    %34 = arith.select %32, %29, %33 : vector<128x128xi1>, vector<128x128xf32>
    %cst_27 = arith.constant dense<0xFF800000> : vector<128xf32>
    %35 = vector.multi_reduction <maximumf>, %34, %cst_27 [0] : vector<128x128xf32> to vector<128xf32>
    %36 = vector.shape_cast %35 : vector<128xf32> to vector<1x128xf32>
    %37 = vector.broadcast %36 : vector<1x128xf32> to vector<128x128xf32>
    %38 = arith.subf %34, %37 : vector<128x128xf32>
    %39 = math.exp %38 : vector<128x128xf32>
    %cst_28 = arith.constant dense<0.000000e+00> : vector<128xf32>
    %40 = vector.multi_reduction <add>, %39, %cst_28 [0] : vector<128x128xf32> to vector<128xf32>
    %41 = vector.shape_cast %40 : vector<128xf32> to vector<1x128xf32>
    %42 = tpu.reciprocal %41 : vector<1x128xf32> -> vector<1x128xf32>
    %c0_29 = arith.constant 0 : index
    %c0_30 = arith.constant 0 : index
    %43 = vector.load %arg11[%c0_29, %c0_30] : memref<1x128xf32, #tpu.memory_space<vmem>>, vector<1x128xf32>
    tpu.vector_store %arg11[%c0_29, %c0_30], %42 {strides = array<i32>} : memref<1x128xf32, #tpu.memory_space<vmem>>, vector<1x128xf32>,
    return
  }
  func.func @transform_0(%arg0: i32) -> (i32, i32) {
    %c0_i32 = arith.constant 0 : i32
    %c0_i32_0 = arith.constant 0 : i32
    return %arg0, %c0_i32 : i32, i32
  }
  func.func @transform_1(%arg0: i32) -> (i32, i32) {
    %c0_i32 = arith.constant 0 : i32
    %c0_i32_0 = arith.constant 0 : i32
    %c0_i32_1 = arith.constant 0 : i32
    return %c0_i32, %c0_i32_0 : i32, i32
  }
  func.func @transform_2(%arg0: i32) -> (i32, i32) {
    %c0_i32 = arith.constant 0 : i32
    %c0_i32_0 = arith.constant 0 : i32
    %c0_i32_1 = arith.constant 0 : i32
    return %c0_i32, %c0_i32_0 : i32, i32
  }
  func.func @transform_3(%arg0: i32) -> (i32, i32) {
    %c0_i32 = arith.constant 0 : i32
    %c0_i32_0 = arith.constant 0 : i32
    %c0_i32_1 = arith.constant 0 : i32
    return %c0_i32, %c0_i32_0 : i32, i32
  }
  func.func @transform_4(%arg0: i32) -> (i32, i32) {
    %c0_i32 = arith.constant 0 : i32
    %c0_i32_0 = arith.constant 0 : i32
    %c0_i32_1 = arith.constant 0 : i32
    return %c0_i32, %c0_i32_0 : i32, i32
  }
  func.func @transform_5(%arg0: i32) -> (i32, i32) {
    %c0_i32 = arith.constant 0 : i32
    %c0_i32_0 = arith.constant 0 : i32
    %c0_i32_1 = arith.constant 0 : i32
    return %c0_i32, %c0_i32_0 : i32, i32
  }
  func.func @transform_6(%arg0: i32) -> (i32, i32) {
    %c0_i32 = arith.constant 0 : i32
    %c0_i32_0 = arith.constant 0 : i32
    %c0_i32_1 = arith.constant 0 : i32
    return %c0_i32, %c0_i32_0 : i32, i32
  }
  func.func @transform_7(%arg0: i32) -> (i32, i32) {
    %c0_i32 = arith.constant 0 : i32
    %c0_i32_0 = arith.constant 0 : i32
    %c0_i32_1 = arith.constant 0 : i32
    return %c0_i32, %c0_i32_0 : i32, i32
  }
  func.func @transform_8(%arg0: i32) -> (i32, i32) {
    %c0_i32 = arith.constant 0 : i32
    %c0_i32_0 = arith.constant 0 : i32
    %c0_i32_1 = arith.constant 0 : i32
    return %c0_i32, %c0_i32_0 : i32, i32
  }
  func.func @transform_9(%arg0: i32) -> (i32, i32) {
    %c0_i32 = arith.constant 0 : i32
    %c0_i32_0 = arith.constant 0 : i32
    return %arg0, %c0_i32 : i32, i32
  }
  func.func @transform_10(%arg0: i32) -> (i32, i32) {
    %c0_i32 = arith.constant 0 : i32
    %c0_i32_0 = arith.constant 0 : i32
    return %c0_i32, %arg0 : i32, i32
  }
}

</mosaic_0001>

<llo_original>
// kernel: tpu_custom_call.1
$region0: #{tpu_custom_call.1}
  #allocation0 [shape = 'u32[]', space=smem, size = 0x4, offset = 0x4, fixed_abs, tag = 'smem constant byte address 0x4 - core index']
  #allocation1 [shape = 'u32[144,128]{1,0:T(1,128)}', space=vmem, size = 0x12000, scoped, tag = 'internal scratch']
  %s0 = inlined_call_operand.vmem [shape: f32[384,784], index: 0, kind: input, shape index: {}]
  %s1 = inlined_call_operand.vmem [shape: f32[784,128], index: 1, kind: input, shape index: {}]
  %s2 = inlined_call_operand.vmem [shape: f32[1,128], index: 2, kind: input, shape index: {}]
  %s3 = inlined_call_operand.vmem [shape: f32[128,64], index: 3, kind: input, shape index: {}]
  %s4 = inlined_call_operand.vmem [shape: f32[1,64], index: 4, kind: input, shape index: {}]
  %s5 = inlined_call_operand.vmem [shape: f32[64,128], index: 5, kind: input, shape index: {}]
  %s6 = inlined_call_operand.vmem [shape: f32[1,128], index: 6, kind: input, shape index: {}]
  %s7 = inlined_call_operand.vmem [shape: f32[128,64], index: 7, kind: input, shape index: {}]
  %s8 = inlined_call_operand.vmem [shape: f32[128,1], index: 8, kind: input, shape index: {}]
  %s9 = inlined_call_operand.hbm [shape: f32[384,128], index: 9, kind: output, shape index: {0}]
  %s10 = inlined_call_operand.hbm [shape: f32[1,384], index: 10, kind: output, shape index: {1}]
  %11 = xla_tuple %s9, %s10
  %s12 = sld [smem:[#allocation0]]
  $region77: #{tpu_custom_call.1} parent=0
    _
  %s14 = ssub.s32 1, %s12
  %s15 = scalar_select 0, %s14, %s12
  $region1: #{tpu_custom_call.1} parent=0
    #allocation2 [shape = 'u8[131072]{0}', space=vmem, size = 0x20000, scoped, tag = 'output window, operand 0']
    #allocation3 [shape = 's32[2]{0}', space=sflag, size = 0x8, scoped, tag = 'scoped memory for tpu_custom_call.1']
    #allocation4 [shape = 'u8[1024]{0}', space=vmem, size = 0x400, scoped, tag = 'output window, operand 1']
    #allocation5 [shape = 's32[2]{0}', space=sflag, size = 0x8, scoped, tag = 'scoped memory for tpu_custom_call.1']
    %16 = vsyncpa [#allocation3], 0
    %s17 = scalar_lea.sflag [#allocation3], 1
    %18 = vsyncpa %s17, 0
    %19 = vsyncpa [#allocation5], 0
    %s20 = scalar_lea.sflag [#allocation5], 1
    %21 = vsyncpa %s20, 0
    loop: start=0, step=1, limit=5
    $region2: #{tpu_custom_call.1} parent=1 // loop_pre_header
      _
    $region3: #{tpu_custom_call.1} parent=1 // loop_header
      %s23 = sphi 0, %s27
      %p24 = scmp.ge.s32.totalorder %s23, 5
      %s33 = sphi 0, %s35
      %s36 = sphi 0, %s33
      %s37 = sphi 0, %s36
      %s53 = sphi 0, %s37
      %s57 = sphi 0, %s57
      %s59 = sphi 0, %s57
      %s60 = sphi 0, %s59
      %s74 = sphi 0, %s60
      %s78 = sphi 0, %s78
      %s80 = sphi 0, %s78
      %s81 = sphi 0, %s80
      %s95 = sphi 0, %s81
      %s99 = sphi 0, %s99
      %s101 = sphi 0, %s99
      %s102 = sphi 0, %s101
      %s116 = sphi 0, %s102
      %s120 = sphi 0, %s120
      %s122 = sphi 0, %s120
      %s123 = sphi 0, %s122
      %s137 = sphi 0, %s123
      %s141 = sphi 0, %s141
      %s143 = sphi 0, %s141
      %s144 = sphi 0, %s143
      %s158 = sphi 0, %s144
      %s162 = sphi 0, %s162
      %s164 = sphi 0, %s162
      %s165 = sphi 0, %s164
      %s179 = sphi 0, %s165
      %s183 = sphi 0, %s183
      %s185 = sphi 0, %s183
      %s186 = sphi 0, %s185
      %s200 = sphi 0, %s186
      %s204 = sphi 0, %s204
      %s206 = sphi 0, %s204
      %s207 = sphi 0, %s206
      %s221 = sphi 0, %s207
      %s227 = sphi 0, %s229
      %s230 = sphi 0, %s227
      %s231 = sphi 0, %s230
      %s247 = sphi 0, %s231
      %s253 = sphi 0, %s255
      %s256 = sphi 0, %s253
      %s257 = sphi 0, %s256
      %s273 = sphi 0, %s257
    $region4: #{tpu_custom_call.1} parent=1 // loop_header_branch
      %26 = sbr.rel (%p24) target = $region8
    $region5: #{tpu_custom_call.1} parent=1 // loop_body
      %s28 = ssub.s32 %s23, 1
      %s29 = ssub.s32 %s23, 2
      %s30 = sadd.s32 %s23, 1
      %s31 = ssub.s32 %s23, %s30
      %p32 = scmp.eq.s32.totalorder %s31, 0
      %s34 = sadd.s32 %s33, 1
      %s35 = scalar_select %p32, %s33, %s34
      %p38 = pneg %p32
      %p39 = scmp.eq.s32.totalorder %s23, 2
      %p40 = por %p38, %p39
      %p41 = scmp.ne.s32.totalorder %s33, %s36
      %p42 = scmp.eq.s32.totalorder %s23, 0
      %p43 = por %p41, %p42
      %p44 = scmp.ne.s32.totalorder %s33, %s36
      %p45 = scmp.eq.s32.totalorder %s28, 2
      %p46 = por %p44, %p45
      %p47 = scmp.ne.s32.totalorder %s36, %s37
      %p48 = scmp.eq.s32.totalorder %s28, 0
      %p49 = por %p47, %p48
      %p50 = scmp.ne.s32.totalorder %s36, %s37
      %p51 = scmp.eq.s32.totalorder %s29, 2
      %p52 = por %p50, %p51
      %p54 = scmp.ne.s32.totalorder %s37, %s53
      %p55 = scmp.eq.s32.totalorder %s29, 0
      %p56 = por %p54, %p55
      %s58 = sadd.s32 %s57, 1
      %p61 = scmp.eq.s32.totalorder %s23, 2
      %p62 = scmp.ne.s32.totalorder %s57, %s59
      %p63 = scmp.eq.s32.totalorder %s23, 0
      %p64 = por %p62, %p63
      %p65 = scmp.ne.s32.totalorder %s57, %s59
      %p66 = scmp.eq.s32.totalorder %s28, 2
      %p67 = por %p65, %p66
      %p68 = scmp.ne.s32.totalorder %s59, %s60
      %p69 = scmp.eq.s32.totalorder %s28, 0
      %p70 = por %p68, %p69
      %p71 = scmp.ne.s32.totalorder %s59, %s60
      %p72 = scmp.eq.s32.totalorder %s29, 2
      %p73 = por %p71, %p72
      %p75 = scmp.ne.s32.totalorder %s60, %s74
      %p76 = scmp.eq.s32.totalorder %s29, 0
      %p77 = por %p75, %p76
      %s79 = sadd.s32 %s78, 1
      %p82 = scmp.eq.s32.totalorder %s23, 2
      %p83 = scmp.ne.s32.totalorder %s78, %s80
      %p84 = scmp.eq.s32.totalorder %s23, 0
      %p85 = por %p83, %p84
      %p86 = scmp.ne.s32.totalorder %s78, %s80
      %p87 = scmp.eq.s32.totalorder %s28, 2
      %p88 = por %p86, %p87
      %p89 = scmp.ne.s32.totalorder %s80, %s81
      %p90 = scmp.eq.s32.totalorder %s28, 0
      %p91 = por %p89, %p90
      %p92 = scmp.ne.s32.totalorder %s80, %s81
      %p93 = scmp.eq.s32.totalorder %s29, 2
      %p94 = por %p92, %p93
      %p96 = scmp.ne.s32.totalorder %s81, %s95
      %p97 = scmp.eq.s32.totalorder %s29, 0
      %p98 = por %p96, %p97
      %s100 = sadd.s32 %s99, 1
      %p103 = scmp.eq.s32.totalorder %s23, 2
      %p104 = scmp.ne.s32.totalorder %s99, %s101
      %p105 = scmp.eq.s32.totalorder %s23, 0
      %p106 = por %p104, %p105
      %p107 = scmp.ne.s32.totalorder %s99, %s101
      %p108 = scmp.eq.s32.totalorder %s28, 2
      %p109 = por %p107, %p108
      %p110 = scmp.ne.s32.totalorder %s101, %s102
      %p111 = scmp.eq.s32.totalorder %s28, 0
      %p112 = por %p110, %p111
      %p113 = scmp.ne.s32.totalorder %s101, %s102
      %p114 = scmp.eq.s32.totalorder %s29, 2
      %p115 = por %p113, %p114
      %p117 = scmp.ne.s32.totalorder %s102, %s116
      %p118 = scmp.eq.s32.totalorder %s29, 0
      %p119 = por %p117, %p118
      %s121 = sadd.s32 %s120, 1
      %p124 = scmp.eq.s32.totalorder %s23, 2
      %p125 = scmp.ne.s32.totalorder %s120, %s122
      %p126 = scmp.eq.s32.totalorder %s23, 0
      %p127 = por %p125, %p126
      %p128 = scmp.ne.s32.totalorder %s120, %s122
      %p129 = scmp.eq.s32.totalorder %s28, 2
      %p130 = por %p128, %p129
      %p131 = scmp.ne.s32.totalorder %s122, %s123
      %p132 = scmp.eq.s32.totalorder %s28, 0
      %p133 = por %p131, %p132
      %p134 = scmp.ne.s32.totalorder %s122, %s123
      %p135 = scmp.eq.s32.totalorder %s29, 2
      %p136 = por %p134, %p135
      %p138 = scmp.ne.s32.totalorder %s123, %s137
      %p139 = scmp.eq.s32.totalorder %s29, 0
      %p140 = por %p138, %p139
      %s142 = sadd.s32 %s141, 1
      %p145 = scmp.eq.s32.totalorder %s23, 2
      %p146 = scmp.ne.s32.totalorder %s141, %s143
      %p147 = scmp.eq.s32.totalorder %s23, 0
      %p148 = por %p146, %p147
      %p149 = scmp.ne.s32.totalorder %s141, %s143
      %p150 = scmp.eq.s32.totalorder %s28, 2
      %p151 = por %p149, %p150
      %p152 = scmp.ne.s32.totalorder %s143, %s144
      %p153 = scmp.eq.s32.totalorder %s28, 0
      %p154 = por %p152, %p153
      %p155 = scmp.ne.s32.totalorder %s143, %s144
      %p156 = scmp.eq.s32.totalorder %s29, 2
      %p157 = por %p155, %p156
      %p159 = scmp.ne.s32.totalorder %s144, %s158
      %p160 = scmp.eq.s32.totalorder %s29, 0
      %p161 = por %p159, %p160
      %s163 = sadd.s32 %s162, 1
      %p166 = scmp.eq.s32.totalorder %s23, 2
      %p167 = scmp.ne.s32.totalorder %s162, %s164
      %p168 = scmp.eq.s32.totalorder %s23, 0
      %p169 = por %p167, %p168
      %p170 = scmp.ne.s32.totalorder %s162, %s164
      %p171 = scmp.eq.s32.totalorder %s28, 2
      %p172 = por %p170, %p171
      %p173 = scmp.ne.s32.totalorder %s164, %s165
      %p174 = scmp.eq.s32.totalorder %s28, 0
      %p175 = por %p173, %p174
      %p176 = scmp.ne.s32.totalorder %s164, %s165
      %p177 = scmp.eq.s32.totalorder %s29, 2
      %p178 = por %p176, %p177
      %p180 = scmp.ne.s32.totalorder %s165, %s179
      %p181 = scmp.eq.s32.totalorder %s29, 0
      %p182 = por %p180, %p181
      %s184 = sadd.s32 %s183, 1
      %p187 = scmp.eq.s32.totalorder %s23, 2
      %p188 = scmp.ne.s32.totalorder %s183, %s185
      %p189 = scmp.eq.s32.totalorder %s23, 0
      %p190 = por %p188, %p189
      %p191 = scmp.ne.s32.totalorder %s183, %s185
      %p192 = scmp.eq.s32.totalorder %s28, 2
      %p193 = por %p191, %p192
      %p194 = scmp.ne.s32.totalorder %s185, %s186
      %p195 = scmp.eq.s32.totalorder %s28, 0
      %p196 = por %p194, %p195
      %p197 = scmp.ne.s32.totalorder %s185, %s186
      %p198 = scmp.eq.s32.totalorder %s29, 2
      %p199 = por %p197, %p198
      %p201 = scmp.ne.s32.totalorder %s186, %s200
      %p202 = scmp.eq.s32.totalorder %s29, 0
      %p203 = por %p201, %p202
      %s205 = sadd.s32 %s204, 1
      %p208 = scmp.eq.s32.totalorder %s23, 2
      %p209 = scmp.ne.s32.totalorder %s204, %s206
      %p210 = scmp.eq.s32.totalorder %s23, 0
      %p211 = por %p209, %p210
      %p212 = scmp.ne.s32.totalorder %s204, %s206
      %p213 = scmp.eq.s32.totalorder %s28, 2
      %p214 = por %p212, %p213
      %p215 = scmp.ne.s32.totalorder %s206, %s207
      %p216 = scmp.eq.s32.totalorder %s28, 0
      %p217 = por %p215, %p216
      %p218 = scmp.ne.s32.totalorder %s206, %s207
      %p219 = scmp.eq.s32.totalorder %s29, 2
      %p220 = por %p218, %p219
      %p222 = scmp.ne.s32.totalorder %s207, %s221
      %p223 = scmp.eq.s32.totalorder %s29, 0
      %p224 = por %p222, %p223
      %s225 = ssub.s32 %s23, %s30
      %p226 = scmp.eq.s32.totalorder %s225, 0
      %s228 = sadd.s32 %s227, 1
      %s229 = scalar_select %p226, %s227, %s228
      %p232 = pneg %p226
      %p233 = scmp.eq.s32.totalorder %s23, 2
      %p234 = por %p232, %p233
      %p235 = scmp.ne.s32.totalorder %s227, %s230
      %p236 = scmp.eq.s32.totalorder %s23, 0
      %p237 = por %p235, %p236
      %p238 = scmp.ne.s32.totalorder %s227, %s230
      %p239 = scmp.eq.s32.totalorder %s28, 2
      %p240 = por %p238, %p239
      %p241 = scmp.ne.s32.totalorder %s230, %s231
      %p242 = scmp.eq.s32.totalorder %s28, 0
      %p243 = por %p241, %p242
      %p244 = scmp.ne.s32.totalorder %s230, %s231
      %p245 = scmp.eq.s32.totalorder %s29, 2
      %p246 = por %p244, %p245
      %p248 = scmp.ne.s32.totalorder %s231, %s247
      %p249 = scmp.eq.s32.totalorder %s29, 0
      %p250 = por %p248, %p249
      %s251 = ssub.s32 %s23, %s30
      %p252 = scmp.eq.s32.totalorder %s251, 0
      %s254 = sadd.s32 %s253, 1
      %s255 = scalar_select %p252, %s253, %s254
      %p258 = pneg %p252
      %p259 = scmp.eq.s32.totalorder %s23, 2
      %p260 = por %p258, %p259
      %p261 = scmp.ne.s32.totalorder %s253, %s256
      %p262 = scmp.eq.s32.totalorder %s23, 0
      %p263 = por %p261, %p262
      %p264 = scmp.ne.s32.totalorder %s253, %s256
      %p265 = scmp.eq.s32.totalorder %s28, 2
      %p266 = por %p264, %p265
      %p267 = scmp.ne.s32.totalorder %s256, %s257
      %p268 = scmp.eq.s32.totalorder %s28, 0
      %p269 = por %p267, %p268
      %p270 = scmp.ne.s32.totalorder %s256, %s257
      %p271 = scmp.eq.s32.totalorder %s29, 2
      %p272 = por %p270, %p271
      %p274 = scmp.ne.s32.totalorder %s257, %s273
      %p275 = scmp.eq.s32.totalorder %s29, 0
      %p276 = por %p274, %p275
      %p277 = scmp.le.s32.totalorder 1, %s23
      %p278 = scmp.lt.s32.totalorder %s23, 4
      %p279 = pnand %p277, %p278
      %p280 = pneg %p279
      // Predicated region
      $region9: #{tpu_custom_call.1} parent=5 // pred_check
        _
      $region10: #{tpu_custom_call.1} parent=5 // pred_check_branch
        %282 = sbr.rel (%p279) target = $region12
      $region11: #{tpu_custom_call.1} parent=5 // pred_region
        %s283 = ssub.s32 %s23, 1
        // Predicated region
        $region13: #{tpu_custom_call.1} parent=11 // pred_check
          %p284 = pneg %p70
        $region14: #{tpu_custom_call.1} parent=11 // pred_check_branch
          %286 = sbr.rel (%p284) target = $region16
        $region15: #{tpu_custom_call.1} parent=11 // pred_region
          _
        $region16: #{tpu_custom_call.1} parent=11 // pred_fallthru
          _
        // Predicated region
        $region17: #{tpu_custom_call.1} parent=11 // pred_check
          %p287 = pneg %p91
        $region18: #{tpu_custom_call.1} parent=11 // pred_check_branch
          %289 = sbr.rel (%p287) target = $region20
        $region19: #{tpu_custom_call.1} parent=11 // pred_region
          _
        $region20: #{tpu_custom_call.1} parent=11 // pred_fallthru
          _
        // Predicated region
        $region21: #{tpu_custom_call.1} parent=11 // pred_check
          %p290 = pneg %p112
        $region22: #{tpu_custom_call.1} parent=11 // pred_check_branch
          %292 = sbr.rel (%p290) target = $region24
        $region23: #{tpu_custom_call.1} parent=11 // pred_region
          _
        $region24: #{tpu_custom_call.1} parent=11 // pred_fallthru
          _
        // Predicated region
        $region25: #{tpu_custom_call.1} parent=11 // pred_check
          %p293 = pneg %p133
        $region26: #{tpu_custom_call.1} parent=11 // pred_check_branch
          %295 = sbr.rel (%p293) target = $region28
        $region27: #{tpu_custom_call.1} parent=11 // pred_region
          _
        $region28: #{tpu_custom_call.1} parent=11 // pred_fallthru
          _
        // Predicated region
        $region29: #{tpu_custom_call.1} parent=11 // pred_check
          %p296 = pneg %p154
        $region30: #{tpu_custom_call.1} parent=11 // pred_check_branch
          %298 = sbr.rel (%p296) target = $region32
        $region31: #{tpu_custom_call.1} parent=11 // pred_region
          _
        $region32: #{tpu_custom_call.1} parent=11 // pred_fallthru
          _
        // Predicated region
        $region33: #{tpu_custom_call.1} parent=11 // pred_check
          %p299 = pneg %p175
        $region34: #{tpu_custom_call.1} parent=11 // pred_check_branch
          %301 = sbr.rel (%p299) target = $region36
        $region35: #{tpu_custom_call.1} parent=11 // pred_region
          _
        $region36: #{tpu_custom_call.1} parent=11 // pred_fallthru
          _
        // Predicated region
        $region37: #{tpu_custom_call.1} parent=11 // pred_check
          %p302 = pneg %p196
        $region38: #{tpu_custom_call.1} parent=11 // pred_check_branch
          %304 = sbr.rel (%p302) target = $region40
        $region39: #{tpu_custom_call.1} parent=11 // pred_region
          _
        $region40: #{tpu_custom_call.1} parent=11 // pred_fallthru
          _
        // Predicated region
        $region41: #{tpu_custom_call.1} parent=11 // pred_check
          %p305 = pneg %p217
        $region42: #{tpu_custom_call.1} parent=11 // pred_check_branch
          %307 = sbr.rel (%p305) target = $region44
        $region43: #{tpu_custom_call.1} parent=11 // pred_region
          _
        $region44: #{tpu_custom_call.1} parent=11 // pred_fallthru
          _
      $region12: #{tpu_custom_call.1} parent=5 // pred_fallthru
        _
      %p308 = scmp.lt.s32.totalorder %s23, 3
      // Predicated region
      $region45: #{tpu_custom_call.1} parent=5 // pred_check
        %p309 = pneg %p308
      $region46: #{tpu_custom_call.1} parent=5 // pred_check_branch
        %311 = sbr.rel (%p309) target = $region48
      $region47: #{tpu_custom_call.1} parent=5 // pred_region
        // Predicated region
        $region49: #{tpu_custom_call.1} parent=47 // pred_check
          %p312 = pneg %p43
        $region50: #{tpu_custom_call.1} parent=47 // pred_check_branch
          %314 = sbr.rel (%p312) target = $region52
        $region51: #{tpu_custom_call.1} parent=47 // pred_region
          %s315 = smul.u32 16, %s23
          %p316 = scmp.lt.s32.totalorder %s315, 47
          %s317 = scalar_select %p316, %s315, 47
          %s318 = smul.addr %s317, 7
          %s319 = smul.addr %s318, 8
          %s320 = scalar_lea.vmem %s0, %s319
          %s321 = smul.u32 16, %s23
        $region52: #{tpu_custom_call.1} parent=47 // pred_fallthru
          _
      $region48: #{tpu_custom_call.1} parent=5 // pred_fallthru
        _
      %p322 = scmp.le.s32.totalorder 1, %s23
      %p323 = scmp.lt.s32.totalorder %s23, 4
      %p324 = pnand %p322, %p323
      %p325 = pneg %p324
      // Predicated region
      $region53: #{tpu_custom_call.1} parent=5 // pred_check
        _
      $region54: #{tpu_custom_call.1} parent=5 // pred_check_branch
        %327 = sbr.rel (%p324) target = $region56
      $region55: #{tpu_custom_call.1} parent=5 // pred_region
        %s328 = ssub.s32 %s23, 1
        %s329 = smul.u32 16, %s28
        %p330 = scmp.lt.s32.totalorder %s329, 47
        %s331 = scalar_select %p330, %s329, 47
        %s332 = smul.addr %s331, 7
        %s333 = smul.addr %s332, 8
        %s334 = scalar_lea.vmem %s0, %s333
        %p335 = pneg %p49
        %p336 = pneg %p46
        %p337 = pneg %p70
        %p338 = pneg %p67
        %p339 = pneg %p91
        %p340 = pneg %p88
        %p341 = pneg %p112
        %p342 = pneg %p109
        %p343 = pneg %p133
        %p344 = pneg %p130
        %p345 = pneg %p154
        %p346 = pneg %p151
        %p347 = pneg %p175
        %p348 = pneg %p172
        %p349 = pneg %p196
        %p350 = pneg %p193
        %p351 = pneg %p217
        %p352 = pneg %p214
        %p353 = pneg %p243
        %p354 = pneg %p240
        %s355 = sand.u32 %s230, 1
        %s356 = scalar_lea.sflag [#allocation3], %s355
        %s357 = sand.u32 %s230, 1
        %s358 = smul.addr %s357, 128
        %s359 = scalar_lea.vmem [#allocation2], %s358
        %p360 = pneg %p269
        %p361 = pneg %p266
        %s362 = sand.u32 %s256, 1
        %s363 = scalar_lea.sflag [#allocation5], %s362
        %s364 = sand.u32 %s256, 1
        %s365 = scalar_lea.vmem [#allocation4], %s364
        %s366 = smul.u32 16, %s28
        %p367 = scmp.lt.s32.totalorder %s366, 47
        %s368 = scalar_select %p367, %s366, 47
        %s369 = smul.addr %s368, 7
        %s370 = smul.addr %s369, 8
        %s371 = scalar_lea.vmem %s0, %s370
        %s372 = smul.u32 16, %s28
        %s373 = smul.u32 16, %s28
        %v374 = vld [vmem:[%s371] sm:$0xff]
        %v375 = vld [vmem:[%s371 + $0x8] sm:$0xff]
        %v376 = vld [vmem:[%s371 + $0x10] sm:$0xff]
        %v377 = vld [vmem:[%s371 + $0x18] sm:$0xff]
        %v378 = vld [vmem:[%s371 + $0x20] sm:$0xff]
        %v379 = vld [vmem:[%s371 + $0x28] sm:$0xff]
        %v380 = vld [vmem:[%s371 + $0x30] sm:$0xff]
        %v381 = vld [vmem:[%s371 + $0x38] sm:$0xff]
        %v382 = vld [vmem:[%s371 + $0x40] sm:$0xff]
        %v383 = vld [vmem:[%s371 + $0x48] sm:$0xff]
        %v384 = vld [vmem:[%s371 + $0x50] sm:$0xff]
        %v385 = vld [vmem:[%s371 + $0x58] sm:$0xff]
        %v386 = vld [vmem:[%s371 + $0x60] sm:$0xff]
        %v387 = vld [vmem:[%s371 + $0x68] sm:$0xff]
        %v388 = vld [vmem:[%s371 + $0x70] sm:$0xff]
        %v389 = vld [vmem:[%s371 + $0x78] sm:$0xff]
        %v390 = vld [vmem:[%s371 + $0x80] sm:$0xff]
        %v391 = vld [vmem:[%s371 + $0x88] sm:$0xff]
        %v392 = vld [vmem:[%s371 + $0x90] sm:$0xff]
        %v393 = vld [vmem:[%s371 + $0x98] sm:$0xff]
        %v394 = vld [vmem:[%s371 + $0xa0] sm:$0xff]
        %v395 = vld [vmem:[%s371 + $0xa8] sm:$0xff]
        %v396 = vld [vmem:[%s371 + $0xb0] sm:$0xff]
        %v397 = vld [vmem:[%s371 + $0xb8] sm:$0xff]
        %v398 = vld [vmem:[%s371 + $0xc0] sm:$0xff]
        %v399 = vld [vmem:[%s371 + $0xc8] sm:$0xff]
        %v400 = vld [vmem:[%s371 + $0xd0] sm:$0xff]
        %v401 = vld [vmem:[%s371 + $0xd8] sm:$0xff]
        %v402 = vld [vmem:[%s371 + $0xe0] sm:$0xff]
        %v403 = vld [vmem:[%s371 + $0xe8] sm:$0xff]
        %v404 = vld [vmem:[%s371 + $0xf0] sm:$0xff]
        %v405 = vld [vmem:[%s371 + $0xf8] sm:$0xff]
        %v406 = vld [vmem:[%s371 + $0x100] sm:$0xff]
        %v407 = vld [vmem:[%s371 + $0x108] sm:$0xff]
        %v408 = vld [vmem:[%s371 + $0x110] sm:$0xff]
        %v409 = vld [vmem:[%s371 + $0x118] sm:$0xff]
        %v410 = vld [vmem:[%s371 + $0x120] sm:$0xff]
        %v411 = vld [vmem:[%s371 + $0x128] sm:$0xff]
        %v412 = vld [vmem:[%s371 + $0x130] sm:$0xff]
        %v413 = vld [vmem:[%s371 + $0x138] sm:$0xff]
        %v414 = vld [vmem:[%s371 + $0x140] sm:$0xff]
        %v415 = vld [vmem:[%s371 + $0x148] sm:$0xff]
        %v416 = vld [vmem:[%s371 + $0x150] sm:$0xff]
        %v417 = vld [vmem:[%s371 + $0x158] sm:$0xff]
        %v418 = vld [vmem:[%s371 + $0x160] sm:$0xff]
        %v419 = vld [vmem:[%s371 + $0x168] sm:$0xff]
        %v420 = vld [vmem:[%s371 + $0x170] sm:$0xff]
        %v421 = vld [vmem:[%s371 + $0x178] sm:$0xff]
        %v422 = vld [vmem:[%s371 + $0x180] sm:$0xff]
        %v423 = vld [vmem:[%s371 + $0x188] sm:$0xff]
        %v424 = vld [vmem:[%s371 + $0x190] sm:$0xff]
        %v425 = vld [vmem:[%s371 + $0x198] sm:$0xff]
        %v426 = vld [vmem:[%s371 + $0x1a0] sm:$0xff]
        %v427 = vld [vmem:[%s371 + $0x1a8] sm:$0xff]
        %v428 = vld [vmem:[%s371 + $0x1b0] sm:$0xff]
        %v429 = vld [vmem:[%s371 + $0x1b8] sm:$0xff]
        %v430 = vld [vmem:[%s371 + $0x1c0] sm:$0xff]
        %v431 = vld [vmem:[%s371 + $0x1c8] sm:$0xff]
        %v432 = vld [vmem:[%s371 + $0x1d0] sm:$0xff]
        %v433 = vld [vmem:[%s371 + $0x1d8] sm:$0xff]
        %v434 = vld [vmem:[%s371 + $0x1e0] sm:$0xff]
        %v435 = vld [vmem:[%s371 + $0x1e8] sm:$0xff]
        %v436 = vld [vmem:[%s371 + $0x1f0] sm:$0xff]
        %v437 = vld [vmem:[%s371 + $0x1f8] sm:$0xff]
        %v438 = vld [vmem:[%s371 + $0x200] sm:$0xff]
        %v439 = vld [vmem:[%s371 + $0x208] sm:$0xff]
        %v440 = vld [vmem:[%s371 + $0x210] sm:$0xff]
        %v441 = vld [vmem:[%s371 + $0x218] sm:$0xff]
        %v442 = vld [vmem:[%s371 + $0x220] sm:$0xff]
        %v443 = vld [vmem:[%s371 + $0x228] sm:$0xff]
        %v444 = vld [vmem:[%s371 + $0x230] sm:$0xff]
        %v445 = vld [vmem:[%s371 + $0x238] sm:$0xff]
        %v446 = vld [vmem:[%s371 + $0x240] sm:$0xff]
        %v447 = vld [vmem:[%s371 + $0x248] sm:$0xff]
        %v448 = vld [vmem:[%s371 + $0x250] sm:$0xff]
        %v449 = vld [vmem:[%s371 + $0x258] sm:$0xff]
        %v450 = vld [vmem:[%s371 + $0x260] sm:$0xff]
        %v451 = vld [vmem:[%s371 + $0x268] sm:$0xff]
        %v452 = vld [vmem:[%s371 + $0x270] sm:$0xff]
        %v453 = vld [vmem:[%s371 + $0x278] sm:$0xff]
        %v454 = vld [vmem:[%s371 + $0x280] sm:$0xff]
        %v455 = vld [vmem:[%s371 + $0x288] sm:$0xff]
        %v456 = vld [vmem:[%s371 + $0x290] sm:$0xff]
        %v457 = vld [vmem:[%s371 + $0x298] sm:$0xff]
        %v458 = vld [vmem:[%s371 + $0x2a0] sm:$0xff]
        %v459 = vld [vmem:[%s371 + $0x2a8] sm:$0xff]
        %v460 = vld [vmem:[%s371 + $0x2b0] sm:$0xff]
        %v461 = vld [vmem:[%s371 + $0x2b8] sm:$0xff]
        %v462 = vld [vmem:[%s371 + $0x2c0] sm:$0xff]
        %v463 = vld [vmem:[%s371 + $0x2c8] sm:$0xff]
        %v464 = vld [vmem:[%s371 + $0x2d0] sm:$0xff]
        %v465 = vld [vmem:[%s371 + $0x2d8] sm:$0xff]
        %v466 = vld [vmem:[%s371 + $0x2e0] sm:$0xff]
        %v467 = vld [vmem:[%s371 + $0x2e8] sm:$0xff]
        %v468 = vld [vmem:[%s371 + $0x2f0] sm:$0xff]
        %v469 = vld [vmem:[%s371 + $0x2f8] sm:$0xff]
        %v470 = vld [vmem:[%s371 + $0x300] sm:$0xff]
        %v471 = vld [vmem:[%s371 + $0x308] sm:$0xff]
        %v472 = vld [vmem:[%s371 + $0x310] sm:$0xff]
        %v473 = vld [vmem:[%s371 + $0x318] sm:$0xff]
        %v474 = vld [vmem:[%s371 + $0x320] sm:$0xff]
        %v475 = vld [vmem:[%s371 + $0x328] sm:$0xff]
        %v476 = vld [vmem:[%s371 + $0x330] sm:$0xff]
        %v477 = vld [vmem:[%s371 + $0x338] sm:$0xff]
        %v478 = vld [vmem:[%s371 + $0x340] sm:$0xff]
        %v479 = vld [vmem:[%s371 + $0x348] sm:$0xff]
        %v480 = vld [vmem:[%s371 + $0x350] sm:$0xff]
        %v481 = vld [vmem:[%s371 + $0x358] sm:$0xff]
        %v482 = vld [vmem:[%s371 + $0x360] sm:$0xff]
        %v483 = vld [vmem:[%s371 + $0x368] sm:$0xff]
        %v484 = vld [vmem:[%s371 + $0x370] sm:$0xff]
        %v485 = vld [vmem:[%s371 + $0x378] sm:$0xff]
        %v486 = vld [vmem:[%s1] sm:$0xff]
        %v487 = vld [vmem:[%s1 + $0x8] sm:$0xff]
        %v488 = vld [vmem:[%s1 + $0x10] sm:$0xff]
        %v489 = vld [vmem:[%s1 + $0x18] sm:$0xff]
        %v490 = vld [vmem:[%s1 + $0x20] sm:$0xff]
        %v491 = vld [vmem:[%s1 + $0x28] sm:$0xff]
        %v492 = vld [vmem:[%s1 + $0x30] sm:$0xff]
        %v493 = vld [vmem:[%s1 + $0x38] sm:$0xff]
        %v494 = vld [vmem:[%s1 + $0x40] sm:$0xff]
        %v495 = vld [vmem:[%s1 + $0x48] sm:$0xff]
        %v496 = vld [vmem:[%s1 + $0x50] sm:$0xff]
        %v497 = vld [vmem:[%s1 + $0x58] sm:$0xff]
        %v498 = vld [vmem:[%s1 + $0x60] sm:$0xff]
        %v499 = vld [vmem:[%s1 + $0x68] sm:$0xff]
        %v500 = vld [vmem:[%s1 + $0x70] sm:$0xff]
        %v501 = vld [vmem:[%s1 + $0x78] sm:$0xff]
        %v502 = vld [vmem:[%s1 + $0x80] sm:$0xff]
        %v503 = vld [vmem:[%s1 + $0x88] sm:$0xff]
        %v504 = vld [vmem:[%s1 + $0x90] sm:$0xff]
        %v505 = vld [vmem:[%s1 + $0x98] sm:$0xff]
        %v506 = vld [vmem:[%s1 + $0xa0] sm:$0xff]
        %v507 = vld [vmem:[%s1 + $0xa8] sm:$0xff]
        %v508 = vld [vmem:[%s1 + $0xb0] sm:$0xff]
        %v509 = vld [vmem:[%s1 + $0xb8] sm:$0xff]
        %v510 = vld [vmem:[%s1 + $0xc0] sm:$0xff]
        %v511 = vld [vmem:[%s1 + $0xc8] sm:$0xff]
        %v512 = vld [vmem:[%s1 + $0xd0] sm:$0xff]
        %v513 = vld [vmem:[%s1 + $0xd8] sm:$0xff]
        %v514 = vld [vmem:[%s1 + $0xe0] sm:$0xff]
        %v515 = vld [vmem:[%s1 + $0xe8] sm:$0xff]
        %v516 = vld [vmem:[%s1 + $0xf0] sm:$0xff]
        %v517 = vld [vmem:[%s1 + $0xf8] sm:$0xff]
        %v518 = vld [vmem:[%s1 + $0x100] sm:$0xff]
        %v519 = vld [vmem:[%s1 + $0x108] sm:$0xff]
        %v520 = vld [vmem:[%s1 + $0x110] sm:$0xff]
        %v521 = vld [vmem:[%s1 + $0x118] sm:$0xff]
        %v522 = vld [vmem:[%s1 + $0x120] sm:$0xff]
        %v523 = vld [vmem:[%s1 + $0x128] sm:$0xff]
        %v524 = vld [vmem:[%s1 + $0x130] sm:$0xff]
        %v525 = vld [vmem:[%s1 + $0x138] sm:$0xff]
        %v526 = vld [vmem:[%s1 + $0x140] sm:$0xff]
        %v527 = vld [vmem:[%s1 + $0x148] sm:$0xff]
        %v528 = vld [vmem:[%s1 + $0x150] sm:$0xff]
        %v529 = vld [vmem:[%s1 + $0x158] sm:$0xff]
        %v530 = vld [vmem:[%s1 + $0x160] sm:$0xff]
        %v531 = vld [vmem:[%s1 + $0x168] sm:$0xff]
        %v532 = vld [vmem:[%s1 + $0x170] sm:$0xff]
        %v533 = vld [vmem:[%s1 + $0x178] sm:$0xff]
        %v534 = vld [vmem:[%s1 + $0x180] sm:$0xff]
        %v535 = vld [vmem:[%s1 + $0x188] sm:$0xff]
        %v536 = vld [vmem:[%s1 + $0x190] sm:$0xff]
        %v537 = vld [vmem:[%s1 + $0x198] sm:$0xff]
        %v538 = vld [vmem:[%s1 + $0x1a0] sm:$0xff]
        %v539 = vld [vmem:[%s1 + $0x1a8] sm:$0xff]
        %v540 = vld [vmem:[%s1 + $0x1b0] sm:$0xff]
        %v541 = vld [vmem:[%s1 + $0x1b8] sm:$0xff]
        %v542 = vld [vmem:[%s1 + $0x1c0] sm:$0xff]
        %v543 = vld [vmem:[%s1 + $0x1c8] sm:$0xff]
        %v544 = vld [vmem:[%s1 + $0x1d0] sm:$0xff]
        %v545 = vld [vmem:[%s1 + $0x1d8] sm:$0xff]
        %v546 = vld [vmem:[%s1 + $0x1e0] sm:$0xff]
        %v547 = vld [vmem:[%s1 + $0x1e8] sm:$0xff]
        %v548 = vld [vmem:[%s1 + $0x1f0] sm:$0xff]
        %v549 = vld [vmem:[%s1 + $0x1f8] sm:$0xff]
        %v550 = vld [vmem:[%s1 + $0x200] sm:$0xff]
        %v551 = vld [vmem:[%s1 + $0x208] sm:$0xff]
        %v552 = vld [vmem:[%s1 + $0x210] sm:$0xff]
        %v553 = vld [vmem:[%s1 + $0x218] sm:$0xff]
        %v554 = vld [vmem:[%s1 + $0x220] sm:$0xff]
        %v555 = vld [vmem:[%s1 + $0x228] sm:$0xff]
        %v556 = vld [vmem:[%s1 + $0x230] sm:$0xff]
        %v557 = vld [vmem:[%s1 + $0x238] sm:$0xff]
        %v558 = vld [vmem:[%s1 + $0x240] sm:$0xff]
        %v559 = vld [vmem:[%s1 + $0x248] sm:$0xff]
        %v560 = vld [vmem:[%s1 + $0x250] sm:$0xff]
        %v561 = vld [vmem:[%s1 + $0x258] sm:$0xff]
        %v562 = vld [vmem:[%s1 + $0x260] sm:$0xff]
        %v563 = vld [vmem:[%s1 + $0x268] sm:$0xff]
        %v564 = vld [vmem:[%s1 + $0x270] sm:$0xff]
        %v565 = vld [vmem:[%s1 + $0x278] sm:$0xff]
        %v566 = vld [vmem:[%s1 + $0x280] sm:$0xff]
        %v567 = vld [vmem:[%s1 + $0x288] sm:$0xff]
        %v568 = vld [vmem:[%s1 + $0x290] sm:$0xff]
        %v569 = vld [vmem:[%s1 + $0x298] sm:$0xff]
        %v570 = vld [vmem:[%s1 + $0x2a0] sm:$0xff]
        %v571 = vld [vmem:[%s1 + $0x2a8] sm:$0xff]
        %v572 = vld [vmem:[%s1 + $0x2b0] sm:$0xff]
        %v573 = vld [vmem:[%s1 + $0x2b8] sm:$0xff]
        %v574 = vld [vmem:[%s1 + $0x2c0] sm:$0xff]
        %v575 = vld [vmem:[%s1 + $0x2c8] sm:$0xff]
        %v576 = vld [vmem:[%s1 + $0x2d0] sm:$0xff]
        %v577 = vld [vmem:[%s1 + $0x2d8] sm:$0xff]
        %v578 = vld [vmem:[%s1 + $0x2e0] sm:$0xff]
        %v579 = vld [vmem:[%s1 + $0x2e8] sm:$0xff]
        %v580 = vld [vmem:[%s1 + $0x2f0] sm:$0xff]
        %v581 = vld [vmem:[%s1 + $0x2f8] sm:$0xff]
        %v582 = vld [vmem:[%s1 + $0x300] sm:$0xff]
        %v583 = vld [vmem:[%s1 + $0x308] sm:$0xff]
        %v584 = vld [vmem:[%s2] sm:$0x1]
        %v586 = vlaneseq
        %v587 = vshrl.u32 %v586, 7
        %v588 = vsub.s32 0, %v587
        %v589 = vrot.slane %v584, %v588
        %vm591 = vcmask 130048
        %v593 = vsel %vm591, %v380, 0
        %v596 = vsel %vm591, %v387, 0
        %v599 = vsel %vm591, %v394, 0
        %v602 = vsel %vm591, %v401, 0
        %v605 = vsel %vm591, %v408, 0
        %v608 = vsel %vm591, %v415, 0
        %v611 = vsel %vm591, %v422, 0
        %v614 = vsel %vm591, %v429, 0
        %v617 = vsel %vm591, %v436, 0
        %v620 = vsel %vm591, %v443, 0
        %v623 = vsel %vm591, %v450, 0
        %v626 = vsel %vm591, %v457, 0
        %v629 = vsel %vm591, %v464, 0
        %v632 = vsel %vm591, %v471, 0
        %v635 = vsel %vm591, %v478, 0
        %v638 = vsel %vm591, %v485, 0
        %640 = vmatprep.subr.mxu0 0.0
        %641 = vmatpush1.msra.mxu0 %v486
        %642 = vmatprep.subr.mxu0 0.0
        %643 = vmatpush1.msra.mxu0 %v487
        %644 = vmatprep.subr.mxu0 0.0
        %645 = vmatpush1.msra.mxu0 %v488
        %646 = vmatprep.subr.mxu0 0.0
        %647 = vmatpush1.msra.mxu0 %v489
        %648 = vmatprep.subr.mxu0 0.0
        %649 = vmatpush1.msra.mxu0 %v490
        %650 = vmatprep.subr.mxu0 0.0
        %651 = vmatpush1.msra.mxu0 %v491
        %652 = vmatprep.subr.mxu0 0.0
        %653 = vmatpush1.msra.mxu0 %v492
        %654 = vmatprep.subr.mxu0 0.0
        %655 = vmatpush1.msra.mxu0 %v493
        %656 = vmatprep.subr.mxu0 0.0
        %657 = vmatpush1.msra.mxu0 %v494
        %658 = vmatprep.subr.mxu0 0.0
        %659 = vmatpush1.msra.mxu0 %v495
        %660 = vmatprep.subr.mxu0 0.0
        %661 = vmatpush1.msra.mxu0 %v496
        %662 = vmatprep.subr.mxu0 0.0
        %663 = vmatpush1.msra.mxu0 %v497
        %664 = vmatprep.subr.mxu0 0.0
        %665 = vmatpush1.msra.mxu0 %v498
        %666 = vmatprep.subr.mxu0 0.0
        %667 = vmatpush1.msra.mxu0 %v499
        %668 = vmatprep.subr.mxu0 0.0
        %669 = vmatpush1.msra.mxu0 %v500
        %670 = vmatprep.subr.mxu0 0.0
        %671 = vmatpush1.msra.mxu0 %v501
        %672 = vmatprep.subr.mxu0 0.0
        %673 = vmatpush1.msra.mxu0 %v502
        %674 = vmatprep.subr.mxu0 0.0
        %675 = vmatpush1.msra.mxu0 %v503
        %676 = vmatprep.subr.mxu0 0.0
        %677 = vmatpush1.msra.mxu0 %v504
        %678 = vmatprep.subr.mxu0 0.0
        %679 = vmatpush1.msra.mxu0 %v505
        %680 = vmatprep.subr.mxu0 0.0
        %681 = vmatpush1.msra.mxu0 %v506
        %682 = vmatprep.subr.mxu0 0.0
        %683 = vmatpush1.msra.mxu0 %v507
        %684 = vmatprep.subr.mxu0 0.0
        %685 = vmatpush1.msra.mxu0 %v508
        %686 = vmatprep.subr.mxu0 0.0
        %687 = vmatpush1.msra.mxu0 %v509
        %688 = vmatprep.subr.mxu0 0.0
        %689 = vmatpush1.msra.mxu0 %v510
        %690 = vmatprep.subr.mxu0 0.0
        %691 = vmatpush1.msra.mxu0 %v511
        %692 = vmatprep.subr.mxu0 0.0
        %693 = vmatpush1.msra.mxu0 %v512
        %694 = vmatprep.subr.mxu0 0.0
        %695 = vmatpush1.msra.mxu0 %v513
        %696 = vmatprep.subr.mxu0 0.0
        %697 = vmatpush1.msra.mxu0 %v514
        %698 = vmatprep.subr.mxu0 0.0
        %699 = vmatpush1.msra.mxu0 %v515
        %700 = vmatprep.subr.mxu0 0.0
        %701 = vmatpush1.msra.mxu0 %v516
        %702 = vmatprep.subr.mxu0 0.0
        %703 = vmatpush1.msra.mxu0 %v517
        %704 = vmatprep.mubr.f32.mxu0 %v375
        %705 = vmatmul.mubr.f32.gmra.mrb[0].mxu0 %v374
        %v706 = vpop.f32.mrb[0].mxu0
        %v707 = vadd.f32 %v589, %v706
        %v708 = vpop.f32.mrb[0].mxu0
        %709 = vmatprep.mubr.f32.mxu0 %v382
        %710 = vmatmul.mubr.f32.gmra.mrb[0].mxu0 %v381
        %v711 = vpop.f32.mrb[0].mxu0
        %v712 = vadd.f32 %v589, %v711
        %v713 = vpop.f32.mrb[0].mxu0
        %714 = vmatprep.mubr.f32.mxu0 %v389
        %715 = vmatmul.mubr.f32.gmra.mrb[0].mxu0 %v388
        %v716 = vpop.f32.mrb[0].mxu0
        %v717 = vadd.f32 %v589, %v716
        %v718 = vpop.f32.mrb[0].mxu0
        %719 = vmatprep.mubr.f32.mxu0 %v396
        %720 = vmatmul.mubr.f32.gmra.mrb[0].mxu0 %v395
        %v721 = vpop.f32.mrb[0].mxu0
        %v722 = vadd.f32 %v589, %v721
        %v723 = vpop.f32.mrb[0].mxu0
        %724 = vmatprep.mubr.f32.mxu0 %v403
        %725 = vmatmul.mubr.f32.gmra.mrb[0].mxu0 %v402
        %v726 = vpop.f32.mrb[0].mxu0
        %v727 = vadd.f32 %v589, %v726
        %v728 = vpop.f32.mrb[0].mxu0
        %729 = vmatprep.mubr.f32.mxu0 %v410
        %730 = vmatmul.mubr.f32.gmra.mrb[0].mxu0 %v409
        %v731 = vpop.f32.mrb[0].mxu0
        %v732 = vadd.f32 %v589, %v731
        %v733 = vpop.f32.mrb[0].mxu0
        %734 = vmatprep.mubr.f32.mxu0 %v417
        %735 = vmatmul.mubr.f32.gmra.mrb[0].mxu0 %v416
        %v736 = vpop.f32.mrb[0].mxu0
        %v737 = vadd.f32 %v589, %v736
        %v738 = vpop.f32.mrb[0].mxu0
        %739 = vmatprep.mubr.f32.mxu0 %v424
        %740 = vmatmul.mubr.f32.gmra.mrb[0].mxu0 %v423
        %v741 = vpop.f32.mrb[0].mxu0
        %v742 = vadd.f32 %v589, %v741
        %v743 = vpop.f32.mrb[0].mxu0
        %744 = vmatprep.mubr.f32.mxu0 %v431
        %745 = vmatmul.mubr.f32.gmra.mrb[0].mxu0 %v430
        %v746 = vpop.f32.mrb[0].mxu0
        %v747 = vadd.f32 %v589, %v746
        %v748 = vpop.f32.mrb[0].mxu0
        %749 = vmatprep.mubr.f32.mxu0 %v438
        %750 = vmatmul.mubr.f32.gmra.mrb[0].mxu0 %v437
        %v751 = vpop.f32.mrb[0].mxu0
        %v752 = vadd.f32 %v589, %v751
        %v753 = vpop.f32.mrb[0].mxu0
        %754 = vmatprep.mubr.f32.mxu0 %v445
        %755 = vmatmul.mubr.f32.gmra.mrb[0].mxu0 %v444
        %v756 = vpop.f32.mrb[0].mxu0
        %v757 = vadd.f32 %v589, %v756
        %v758 = vpop.f32.mrb[0].mxu0
        %759 = vmatprep.mubr.f32.mxu0 %v452
        %760 = vmatmul.mubr.f32.gmra.mrb[0].mxu0 %v451
        %v761 = vpop.f32.mrb[0].mxu0
        %v762 = vadd.f32 %v589, %v761
        %v763 = vpop.f32.mrb[0].mxu0
        %764 = vmatprep.mubr.f32.mxu0 %v459
        %765 = vmatmul.mubr.f32.gmra.mrb[0].mxu0 %v458
        %v766 = vpop.f32.mrb[0].mxu0
        %v767 = vadd.f32 %v589, %v766
        %v768 = vpop.f32.mrb[0].mxu0
        %769 = vmatprep.mubr.f32.mxu0 %v466
        %770 = vmatmul.mubr.f32.gmra.mrb[0].mxu0 %v465
        %v771 = vpop.f32.mrb[0].mxu0
        %v772 = vadd.f32 %v589, %v771
        %v773 = vpop.f32.mrb[0].mxu0
        %774 = vmatprep.mubr.f32.mxu0 %v473
        %775 = vmatmul.mubr.f32.gmra.mrb[0].mxu0 %v472
        %v776 = vpop.f32.mrb[0].mxu0
        %v777 = vadd.f32 %v589, %v776
        %v778 = vpop.f32.mrb[0].mxu0
        %779 = vmatprep.mubr.f32.mxu0 %v480
        %780 = vmatmul.mubr.f32.gmra.mrb[0].mxu0 %v479
        %v781 = vpop.f32.mrb[0].mxu0
        %v782 = vadd.f32 %v589, %v781
        %v783 = vpop.f32.mrb[0].mxu0
        %784 = vdwg.mxu0
        %785 = vmatprep.subr.mxu0 0.0
        %786 = vmatpush1.msra.mxu0 %v518
        %787 = vmatprep.subr.mxu0 0.0
        %788 = vmatpush1.msra.mxu0 %v519
        %789 = vmatprep.subr.mxu0 0.0
        %790 = vmatpush1.msra.mxu0 %v520
        %791 = vmatprep.subr.mxu0 0.0
        %792 = vmatpush1.msra.mxu0 %v521
        %793 = vmatprep.subr.mxu0 0.0
        %794 = vmatpush1.msra.mxu0 %v522
        %795 = vmatprep.subr.mxu0 0.0
        %796 = vmatpush1.msra.mxu0 %v523
        %797 = vmatprep.subr.mxu0 0.0
        %798 = vmatpush1.msra.mxu0 %v524
        %799 = vmatprep.subr.mxu0 0.0
        %800 = vmatpush1.msra.mxu0 %v525
        %801 = vmatprep.subr.mxu0 0.0
        %802 = vmatpush1.msra.mxu0 %v526
        %803 = vmatprep.subr.mxu0 0.0
        %804 = vmatpush1.msra.mxu0 %v527
        %805 = vmatprep.subr.mxu0 0.0
        %806 = vmatpush1.msra.mxu0 %v528
        %807 = vmatprep.subr.mxu0 0.0
        %808 = vmatpush1.msra.mxu0 %v529
        %809 = vmatprep.subr.mxu0 0.0
        %810 = vmatpush1.msra.mxu0 %v530
        %811 = vmatprep.subr.mxu0 0.0
        %812 = vmatpush1.msra.mxu0 %v531
        %813 = vmatprep.subr.mxu0 0.0
        %814 = vmatpush1.msra.mxu0 %v532
        %815 = vmatprep.subr.mxu0 0.0
        %816 = vmatpush1.msra.mxu0 %v533
        %817 = vmatprep.subr.mxu0 0.0
        %818 = vmatpush1.msra.mxu0 %v534
        %819 = vmatprep.subr.mxu0 0.0
        %820 = vmatpush1.msra.mxu0 %v535
        %821 = vmatprep.subr.mxu0 0.0
        %822 = vmatpush1.msra.mxu0 %v536
        %823 = vmatprep.subr.mxu0 0.0
        %824 = vmatpush1.msra.mxu0 %v537
        %825 = vmatprep.subr.mxu0 0.0
        %826 = vmatpush1.msra.mxu0 %v538
        %827 = vmatprep.subr.mxu0 0.0
        %828 = vmatpush1.msra.mxu0 %v539
        %829 = vmatprep.subr.mxu0 0.0
        %830 = vmatpush1.msra.mxu0 %v540
        %831 = vmatprep.subr.mxu0 0.0
        %832 = vmatpush1.msra.mxu0 %v541
        %833 = vmatprep.subr.mxu0 0.0
        %834 = vmatpush1.msra.mxu0 %v542
        %835 = vmatprep.subr.mxu0 0.0
        %836 = vmatpush1.msra.mxu0 %v543
        %837 = vmatprep.subr.mxu0 0.0
        %838 = vmatpush1.msra.mxu0 %v544
        %839 = vmatprep.subr.mxu0 0.0
        %840 = vmatpush1.msra.mxu0 %v545
        %841 = vmatprep.subr.mxu0 0.0
        %842 = vmatpush1.msra.mxu0 %v546
        %843 = vmatprep.subr.mxu0 0.0
        %844 = vmatpush1.msra.mxu0 %v547
        %845 = vmatprep.subr.mxu0 0.0
        %846 = vmatpush1.msra.mxu0 %v548
        %847 = vmatprep.subr.mxu0 0.0
        %848 = vmatpush1.msra.mxu0 %v549
        %849 = vmatprep.mubr.f32.mxu0 %v377
        %850 = vmatmul.mubr.f32.gmra.mrb[0].mxu0 %v376
        %v851 = vpop.f32.mrb[0].mxu0
        %v852 = vadd.f32 %v707, %v851
        %v853 = vpop.f32.mrb[0].mxu0
        %854 = vmatprep.mubr.f32.mxu0 %v384
        %855 = vmatmul.mubr.f32.gmra.mrb[0].mxu0 %v383
        %v856 = vpop.f32.mrb[0].mxu0
        %v857 = vadd.f32 %v712, %v856
        %v858 = vpop.f32.mrb[0].mxu0
        %859 = vmatprep.mubr.f32.mxu0 %v391
        %860 = vmatmul.mubr.f32.gmra.mrb[0].mxu0 %v390
        %v861 = vpop.f32.mrb[0].mxu0
        %v862 = vadd.f32 %v717, %v861
        %v863 = vpop.f32.mrb[0].mxu0
        %864 = vmatprep.mubr.f32.mxu0 %v398
        %865 = vmatmul.mubr.f32.gmra.mrb[0].mxu0 %v397
        %v866 = vpop.f32.mrb[0].mxu0
        %v867 = vadd.f32 %v722, %v866
        %v868 = vpop.f32.mrb[0].mxu0
        %869 = vmatprep.mubr.f32.mxu0 %v405
        %870 = vmatmul.mubr.f32.gmra.mrb[0].mxu0 %v404
        %v871 = vpop.f32.mrb[0].mxu0
        %v872 = vadd.f32 %v727, %v871
        %v873 = vpop.f32.mrb[0].mxu0
        %874 = vmatprep.mubr.f32.mxu0 %v412
        %875 = vmatmul.mubr.f32.gmra.mrb[0].mxu0 %v411
        %v876 = vpop.f32.mrb[0].mxu0
        %v877 = vadd.f32 %v732, %v876
        %v878 = vpop.f32.mrb[0].mxu0
        %879 = vmatprep.mubr.f32.mxu0 %v419
        %880 = vmatmul.mubr.f32.gmra.mrb[0].mxu0 %v418
        %v881 = vpop.f32.mrb[0].mxu0
        %v882 = vadd.f32 %v737, %v881
        %v883 = vpop.f32.mrb[0].mxu0
        %884 = vmatprep.mubr.f32.mxu0 %v426
        %885 = vmatmul.mubr.f32.gmra.mrb[0].mxu0 %v425
        %v886 = vpop.f32.mrb[0].mxu0
        %v887 = vadd.f32 %v742, %v886
        %v888 = vpop.f32.mrb[0].mxu0
        %889 = vmatprep.mubr.f32.mxu0 %v433
        %890 = vmatmul.mubr.f32.gmra.mrb[0].mxu0 %v432
        %v891 = vpop.f32.mrb[0].mxu0
        %v892 = vadd.f32 %v747, %v891
        %v893 = vpop.f32.mrb[0].mxu0
        %894 = vmatprep.mubr.f32.mxu0 %v440
        %895 = vmatmul.mubr.f32.gmra.mrb[0].mxu0 %v439
        %v896 = vpop.f32.mrb[0].mxu0
        %v897 = vadd.f32 %v752, %v896
        %v898 = vpop.f32.mrb[0].mxu0
        %899 = vmatprep.mubr.f32.mxu0 %v447
        %900 = vmatmul.mubr.f32.gmra.mrb[0].mxu0 %v446
        %v901 = vpop.f32.mrb[0].mxu0
        %v902 = vadd.f32 %v757, %v901
        %v903 = vpop.f32.mrb[0].mxu0
        %904 = vmatprep.mubr.f32.mxu0 %v454
        %905 = vmatmul.mubr.f32.gmra.mrb[0].mxu0 %v453
        %v906 = vpop.f32.mrb[0].mxu0
        %v907 = vadd.f32 %v762, %v906
        %v908 = vpop.f32.mrb[0].mxu0
        %909 = vmatprep.mubr.f32.mxu0 %v461
        %910 = vmatmul.mubr.f32.gmra.mrb[0].mxu0 %v460
        %v911 = vpop.f32.mrb[0].mxu0
        %v912 = vadd.f32 %v767, %v911
        %v913 = vpop.f32.mrb[0].mxu0
        %914 = vmatprep.mubr.f32.mxu0 %v468
        %915 = vmatmul.mubr.f32.gmra.mrb[0].mxu0 %v467
        %v916 = vpop.f32.mrb[0].mxu0
        %v917 = vadd.f32 %v772, %v916
        %v918 = vpop.f32.mrb[0].mxu0
        %919 = vmatprep.mubr.f32.mxu0 %v475
        %920 = vmatmul.mubr.f32.gmra.mrb[0].mxu0 %v474
        %v921 = vpop.f32.mrb[0].mxu0
        %v922 = vadd.f32 %v777, %v921
        %v923 = vpop.f32.mrb[0].mxu0
        %924 = vmatprep.mubr.f32.mxu0 %v482
        %925 = vmatmul.mubr.f32.gmra.mrb[0].mxu0 %v481
        %v926 = vpop.f32.mrb[0].mxu0
        %v927 = vadd.f32 %v782, %v926
        %v928 = vpop.f32.mrb[0].mxu0
        %929 = vdwg.mxu0
        %930 = vmatprep.subr.mxu0 0.0
        %931 = vmatpush1.msra.mxu0 %v550
        %932 = vmatprep.subr.mxu0 0.0
        %933 = vmatpush1.msra.mxu0 %v551
        %934 = vmatprep.subr.mxu0 0.0
        %935 = vmatpush1.msra.mxu0 %v552
        %936 = vmatprep.subr.mxu0 0.0
        %937 = vmatpush1.msra.mxu0 %v553
        %938 = vmatprep.subr.mxu0 0.0
        %939 = vmatpush1.msra.mxu0 %v554
        %940 = vmatprep.subr.mxu0 0.0
        %941 = vmatpush1.msra.mxu0 %v555
        %942 = vmatprep.subr.mxu0 0.0
        %943 = vmatpush1.msra.mxu0 %v556
        %944 = vmatprep.subr.mxu0 0.0
        %945 = vmatpush1.msra.mxu0 %v557
        %946 = vmatprep.subr.mxu0 0.0
        %947 = vmatpush1.msra.mxu0 %v558
        %948 = vmatprep.subr.mxu0 0.0
        %949 = vmatpush1.msra.mxu0 %v559
        %950 = vmatprep.subr.mxu0 0.0
        %951 = vmatpush1.msra.mxu0 %v560
        %952 = vmatprep.subr.mxu0 0.0
        %953 = vmatpush1.msra.mxu0 %v561
        %954 = vmatprep.subr.mxu0 0.0
        %955 = vmatpush1.msra.mxu0 %v562
        %956 = vmatprep.subr.mxu0 0.0
        %957 = vmatpush1.msra.mxu0 %v563
        %958 = vmatprep.subr.mxu0 0.0
        %959 = vmatpush1.msra.mxu0 %v564
        %960 = vmatprep.subr.mxu0 0.0
        %961 = vmatpush1.msra.mxu0 %v565
        %962 = vmatprep.subr.mxu0 0.0
        %963 = vmatpush1.msra.mxu0 %v566
        %964 = vmatprep.subr.mxu0 0.0
        %965 = vmatpush1.msra.mxu0 %v567
        %966 = vmatprep.subr.mxu0 0.0
        %967 = vmatpush1.msra.mxu0 %v568
        %968 = vmatprep.subr.mxu0 0.0
        %969 = vmatpush1.msra.mxu0 %v569
        %970 = vmatprep.subr.mxu0 0.0
        %971 = vmatpush1.msra.mxu0 %v570
        %972 = vmatprep.subr.mxu0 0.0
        %973 = vmatpush1.msra.mxu0 %v571
        %974 = vmatprep.subr.mxu0 0.0
        %975 = vmatpush1.msra.mxu0 %v572
        %976 = vmatprep.subr.mxu0 0.0
        %977 = vmatpush1.msra.mxu0 %v573
        %978 = vmatprep.subr.mxu0 0.0
        %979 = vmatpush1.msra.mxu0 %v574
        %980 = vmatprep.subr.mxu0 0.0
        %981 = vmatpush1.msra.mxu0 %v575
        %982 = vmatprep.subr.mxu0 0.0
        %983 = vmatpush1.msra.mxu0 %v576
        %984 = vmatprep.subr.mxu0 0.0
        %985 = vmatpush1.msra.mxu0 %v577
        %986 = vmatprep.subr.mxu0 0.0
        %987 = vmatpush1.msra.mxu0 %v578
        %988 = vmatprep.subr.mxu0 0.0
        %989 = vmatpush1.msra.mxu0 %v579
        %990 = vmatprep.subr.mxu0 0.0
        %991 = vmatpush1.msra.mxu0 %v580
        %992 = vmatprep.subr.mxu0 0.0
        %993 = vmatpush1.msra.mxu0 %v581
        %994 = vmatprep.mubr.f32.mxu0 %v379
        %995 = vmatmul.mubr.f32.gmra.mrb[0].mxu0 %v378
        %v996 = vpop.f32.mrb[0].mxu0
        %v997 = vadd.f32 %v852, %v996
        %v998 = vpop.f32.mrb[0].mxu0
        %999 = vmatprep.mubr.f32.mxu0 %v386
        %1000 = vmatmul.mubr.f32.gmra.mrb[0].mxu0 %v385
        %v1001 = vpop.f32.mrb[0].mxu0
        %v1002 = vadd.f32 %v857, %v1001
        %v1003 = vpop.f32.mrb[0].mxu0
        %1004 = vmatprep.mubr.f32.mxu0 %v393
        %1005 = vmatmul.mubr.f32.gmra.mrb[0].mxu0 %v392
        %v1006 = vpop.f32.mrb[0].mxu0
        %v1007 = vadd.f32 %v862, %v1006
        %v1008 = vpop.f32.mrb[0].mxu0
        %1009 = vmatprep.mubr.f32.mxu0 %v400
        %1010 = vmatmul.mubr.f32.gmra.mrb[0].mxu0 %v399
        %v1011 = vpop.f32.mrb[0].mxu0
        %v1012 = vadd.f32 %v867, %v1011
        %v1013 = vpop.f32.mrb[0].mxu0
        %1014 = vmatprep.mubr.f32.mxu0 %v407
        %1015 = vmatmul.mubr.f32.gmra.mrb[0].mxu0 %v406
        %v1016 = vpop.f32.mrb[0].mxu0
        %v1017 = vadd.f32 %v872, %v1016
        %v1018 = vpop.f32.mrb[0].mxu0
        %1019 = vmatprep.mubr.f32.mxu0 %v414
        %1020 = vmatmul.mubr.f32.gmra.mrb[0].mxu0 %v413
        %v1021 = vpop.f32.mrb[0].mxu0
        %v1022 = vadd.f32 %v877, %v1021
        %v1023 = vpop.f32.mrb[0].mxu0
        %1024 = vmatprep.mubr.f32.mxu0 %v421
        %1025 = vmatmul.mubr.f32.gmra.mrb[0].mxu0 %v420
        %v1026 = vpop.f32.mrb[0].mxu0
        %v1027 = vadd.f32 %v882, %v1026
        %v1028 = vpop.f32.mrb[0].mxu0
        %1029 = vmatprep.mubr.f32.mxu0 %v428
        %1030 = vmatmul.mubr.f32.gmra.mrb[0].mxu0 %v427
        %v1031 = vpop.f32.mrb[0].mxu0
        %v1032 = vadd.f32 %v887, %v1031
        %v1033 = vpop.f32.mrb[0].mxu0
        %1034 = vmatprep.mubr.f32.mxu0 %v435
        %1035 = vmatmul.mubr.f32.gmra.mrb[0].mxu0 %v434
        %v1036 = vpop.f32.mrb[0].mxu0
        %v1037 = vadd.f32 %v892, %v1036
        %v1038 = vpop.f32.mrb[0].mxu0
        %1039 = vmatprep.mubr.f32.mxu0 %v442
        %1040 = vmatmul.mubr.f32.gmra.mrb[0].mxu0 %v441
        %v1041 = vpop.f32.mrb[0].mxu0
        %v1042 = vadd.f32 %v897, %v1041
        %v1043 = vpop.f32.mrb[0].mxu0
        %1044 = vmatprep.mubr.f32.mxu0 %v449
        %1045 = vmatmul.mubr.f32.gmra.mrb[0].mxu0 %v448
        %v1046 = vpop.f32.mrb[0].mxu0
        %v1047 = vadd.f32 %v902, %v1046
        %v1048 = vpop.f32.mrb[0].mxu0
        %1049 = vmatprep.mubr.f32.mxu0 %v456
        %1050 = vmatmul.mubr.f32.gmra.mrb[0].mxu0 %v455
        %v1051 = vpop.f32.mrb[0].mxu0
        %v1052 = vadd.f32 %v907, %v1051
        %v1053 = vpop.f32.mrb[0].mxu0
        %1054 = vmatprep.mubr.f32.mxu0 %v463
        %1055 = vmatmul.mubr.f32.gmra.mrb[0].mxu0 %v462
        %v1056 = vpop.f32.mrb[0].mxu0
        %v1057 = vadd.f32 %v912, %v1056
        %v1058 = vpop.f32.mrb[0].mxu0
        %1059 = vmatprep.mubr.f32.mxu0 %v470
        %1060 = vmatmul.mubr.f32.gmra.mrb[0].mxu0 %v469
        %v1061 = vpop.f32.mrb[0].mxu0
        %v1062 = vadd.f32 %v917, %v1061
        %v1063 = vpop.f32.mrb[0].mxu0
        %1064 = vmatprep.mubr.f32.mxu0 %v477
        %1065 = vmatmul.mubr.f32.gmra.mrb[0].mxu0 %v476
        %v1066 = vpop.f32.mrb[0].mxu0
        %v1067 = vadd.f32 %v922, %v1066
        %v1068 = vpop.f32.mrb[0].mxu0
        %1069 = vmatprep.mubr.f32.mxu0 %v484
        %1070 = vmatmul.mubr.f32.gmra.mrb[0].mxu0 %v483
        %v1071 = vpop.f32.mrb[0].mxu0
        %v1072 = vadd.f32 %v927, %v1071
        %v1073 = vpop.f32.mrb[0].mxu0
        %1074 = vdwg.mxu0
        %1075 = vmatprep.subr.mxu0 0.0
        %1076 = vmatpush1.msra.mxu0 %v582
        %1077 = vmatprep.subr.mxu0 0.0
        %1078 = vmatpush1.msra.mxu0 %v583
        %1079 = vmatprep.subr.mxu0 0.0
        %1080 = vmatpush1.msra.mxu0 0.0
        %1081 = vmatprep.subr.mxu0 0.0
        %1082 = vmatpush1.msra.mxu0 0.0
        %1083 = vmatprep.subr.mxu0 0.0
        %1084 = vmatpush1.msra.mxu0 0.0
        %1085 = vmatprep.subr.mxu0 0.0
        %1086 = vmatpush1.msra.mxu0 0.0
        %1087 = vmatprep.subr.mxu0 0.0
        %1088 = vmatpush1.msra.mxu0 0.0
        %1089 = vmatprep.subr.mxu0 0.0
        %1090 = vmatpush1.msra.mxu0 0.0
        %1091 = vmatprep.subr.mxu0 0.0
        %1092 = vmatpush1.msra.mxu0 0.0
        %1093 = vmatprep.subr.mxu0 0.0
        %1094 = vmatpush1.msra.mxu0 0.0
        %1095 = vmatprep.subr.mxu0 0.0
        %1096 = vmatpush1.msra.mxu0 0.0
        %1097 = vmatprep.subr.mxu0 0.0
        %1098 = vmatpush1.msra.mxu0 0.0
        %1099 = vmatprep.subr.mxu0 0.0
        %1100 = vmatpush1.msra.mxu0 0.0
        %1101 = vmatprep.subr.mxu0 0.0
        %1102 = vmatpush1.msra.mxu0 0.0
        %1103 = vmatprep.subr.mxu0 0.0
        %1104 = vmatpush1.msra.mxu0 0.0
        %1105 = vmatprep.subr.mxu0 0.0
        %1106 = vmatpush1.msra.mxu0 0.0
        %1107 = vmatprep.subr.mxu0 0.0
        %1108 = vmatpush1.msra.mxu0 0.0
        %1109 = vmatprep.subr.mxu0 0.0
        %1110 = vmatpush1.msra.mxu0 0.0
        %1111 = vmatprep.subr.mxu0 0.0
        %1112 = vmatpush1.msra.mxu0 0.0
        %1113 = vmatprep.subr.mxu0 0.0
        %1114 = vmatpush1.msra.mxu0 0.0
        %1115 = vmatprep.subr.mxu0 0.0
        %1116 = vmatpush1.msra.mxu0 0.0
        %1117 = vmatprep.subr.mxu0 0.0
        %1118 = vmatpush1.msra.mxu0 0.0
        %1119 = vmatprep.subr.mxu0 0.0
        %1120 = vmatpush1.msra.mxu0 0.0
        %1121 = vmatprep.subr.mxu0 0.0
        %1122 = vmatpush1.msra.mxu0 0.0
        %1123 = vmatprep.subr.mxu0 0.0
        %1124 = vmatpush1.msra.mxu0 0.0
        %1125 = vmatprep.subr.mxu0 0.0
        %1126 = vmatpush1.msra.mxu0 0.0
        %1127 = vmatprep.subr.mxu0 0.0
        %1128 = vmatpush1.msra.mxu0 0.0
        %1129 = vmatprep.subr.mxu0 0.0
        %1130 = vmatpush1.msra.mxu0 0.0
        %1131 = vmatprep.subr.mxu0 0.0
        %1132 = vmatpush1.msra.mxu0 0.0
        %1133 = vmatprep.subr.mxu0 0.0
        %1134 = vmatpush1.msra.mxu0 0.0
        %1135 = vmatprep.subr.mxu0 0.0
        %1136 = vmatpush1.msra.mxu0 0.0
        %1137 = vmatprep.subr.mxu0 0.0
        %1138 = vmatpush1.msra.mxu0 0.0
        %1139 = vmatprep.mubr.f32.mxu0 0.0
        %1140 = vmatmul.mubr.f32.gmra.mrb[0].mxu0 %v593
        %v1141 = vpop.f32.mrb[0].mxu0
        %v1142 = vadd.f32 %v997, %v1141
        %v1143 = vpop.f32.mrb[0].mxu0
        %1144 = vmatprep.mubr.f32.mxu0 0.0
        %1145 = vmatmul.mubr.f32.gmra.mrb[0].mxu0 %v596
        %v1146 = vpop.f32.mrb[0].mxu0
        %v1147 = vadd.f32 %v1002, %v1146
        %v1148 = vpop.f32.mrb[0].mxu0
        %1149 = vmatprep.mubr.f32.mxu0 0.0
        %1150 = vmatmul.mubr.f32.gmra.mrb[0].mxu0 %v599
        %v1151 = vpop.f32.mrb[0].mxu0
        %v1152 = vadd.f32 %v1007, %v1151
        %v1153 = vpop.f32.mrb[0].mxu0
        %1154 = vmatprep.mubr.f32.mxu0 0.0
        %1155 = vmatmul.mubr.f32.gmra.mrb[0].mxu0 %v602
        %v1156 = vpop.f32.mrb[0].mxu0
        %v1157 = vadd.f32 %v1012, %v1156
        %v1158 = vpop.f32.mrb[0].mxu0
        %1159 = vmatprep.mubr.f32.mxu0 0.0
        %1160 = vmatmul.mubr.f32.gmra.mrb[0].mxu0 %v605
        %v1161 = vpop.f32.mrb[0].mxu0
        %v1162 = vadd.f32 %v1017, %v1161
        %v1163 = vpop.f32.mrb[0].mxu0
        %1164 = vmatprep.mubr.f32.mxu0 0.0
        %1165 = vmatmul.mubr.f32.gmra.mrb[0].mxu0 %v608
        %v1166 = vpop.f32.mrb[0].mxu0
        %v1167 = vadd.f32 %v1022, %v1166
        %v1168 = vpop.f32.mrb[0].mxu0
        %1169 = vmatprep.mubr.f32.mxu0 0.0
        %1170 = vmatmul.mubr.f32.gmra.mrb[0].mxu0 %v611
        %v1171 = vpop.f32.mrb[0].mxu0
        %v1172 = vadd.f32 %v1027, %v1171
        %v1173 = vpop.f32.mrb[0].mxu0
        %1174 = vmatprep.mubr.f32.mxu0 0.0
        %1175 = vmatmul.mubr.f32.gmra.mrb[0].mxu0 %v614
        %v1176 = vpop.f32.mrb[0].mxu0
        %v1177 = vadd.f32 %v1032, %v1176
        %v1178 = vpop.f32.mrb[0].mxu0
        %1179 = vmatprep.mubr.f32.mxu0 0.0
        %1180 = vmatmul.mubr.f32.gmra.mrb[0].mxu0 %v617
        %v1181 = vpop.f32.mrb[0].mxu0
        %v1182 = vadd.f32 %v1037, %v1181
        %v1183 = vpop.f32.mrb[0].mxu0
        %1184 = vmatprep.mubr.f32.mxu0 0.0
        %1185 = vmatmul.mubr.f32.gmra.mrb[0].mxu0 %v620
        %v1186 = vpop.f32.mrb[0].mxu0
        %v1187 = vadd.f32 %v1042, %v1186
        %v1188 = vpop.f32.mrb[0].mxu0
        %1189 = vmatprep.mubr.f32.mxu0 0.0
        %1190 = vmatmul.mubr.f32.gmra.mrb[0].mxu0 %v623
        %v1191 = vpop.f32.mrb[0].mxu0
        %v1192 = vadd.f32 %v1047, %v1191
        %v1193 = vpop.f32.mrb[0].mxu0
        %1194 = vmatprep.mubr.f32.mxu0 0.0
        %1195 = vmatmul.mubr.f32.gmra.mrb[0].mxu0 %v626
        %v1196 = vpop.f32.mrb[0].mxu0
        %v1197 = vadd.f32 %v1052, %v1196
        %v1198 = vpop.f32.mrb[0].mxu0
        %1199 = vmatprep.mubr.f32.mxu0 0.0
        %1200 = vmatmul.mubr.f32.gmra.mrb[0].mxu0 %v629
        %v1201 = vpop.f32.mrb[0].mxu0
        %v1202 = vadd.f32 %v1057, %v1201
        %v1203 = vpop.f32.mrb[0].mxu0
        %1204 = vmatprep.mubr.f32.mxu0 0.0
        %1205 = vmatmul.mubr.f32.gmra.mrb[0].mxu0 %v632
        %v1206 = vpop.f32.mrb[0].mxu0
        %v1207 = vadd.f32 %v1062, %v1206
        %v1208 = vpop.f32.mrb[0].mxu0
        %1209 = vmatprep.mubr.f32.mxu0 0.0
        %1210 = vmatmul.mubr.f32.gmra.mrb[0].mxu0 %v635
        %v1211 = vpop.f32.mrb[0].mxu0
        %v1212 = vadd.f32 %v1067, %v1211
        %v1213 = vpop.f32.mrb[0].mxu0
        %1214 = vmatprep.mubr.f32.mxu0 0.0
        %1215 = vmatmul.mubr.f32.gmra.mrb[0].mxu0 %v638
        %v1216 = vpop.f32.mrb[0].mxu0
        %v1217 = vadd.f32 %v1072, %v1216
        %v1218 = vpop.f32.mrb[0].mxu0
        %1219 = vdwg.mxu0
        %v1220 = vmax.f32 %v1142, 0.0
        %v1221 = vmax.f32 %v1147, 0.0
        %v1222 = vmax.f32 %v1152, 0.0
        %v1223 = vmax.f32 %v1157, 0.0
        %v1224 = vmax.f32 %v1162, 0.0
        %v1225 = vmax.f32 %v1167, 0.0
        %v1226 = vmax.f32 %v1172, 0.0
        %v1227 = vmax.f32 %v1177, 0.0
        %v1228 = vmax.f32 %v1182, 0.0
        %v1229 = vmax.f32 %v1187, 0.0
        %v1230 = vmax.f32 %v1192, 0.0
        %v1231 = vmax.f32 %v1197, 0.0
        %v1232 = vmax.f32 %v1202, 0.0
        %v1233 = vmax.f32 %v1207, 0.0
        %v1234 = vmax.f32 %v1212, 0.0
        %v1235 = vmax.f32 %v1217, 0.0
        %v1236 = vld [vmem:[%s3] sm:$0xff]
        %v1237 = vld [vmem:[%s3 + $0x8] sm:$0xff]
        %v1238 = vld [vmem:[%s3 + $0x10] sm:$0xff]
        %v1239 = vld [vmem:[%s3 + $0x18] sm:$0xff]
        %v1240 = vld [vmem:[%s3 + $0x20] sm:$0xff]
        %v1241 = vld [vmem:[%s3 + $0x28] sm:$0xff]
        %v1242 = vld [vmem:[%s3 + $0x30] sm:$0xff]
        %v1243 = vld [vmem:[%s3 + $0x38] sm:$0xff]
        %v1244 = vld [vmem:[%s3 + $0x40] sm:$0xff]
        %v1245 = vld [vmem:[%s3 + $0x48] sm:$0xff]
        %v1246 = vld [vmem:[%s3 + $0x50] sm:$0xff]
        %v1247 = vld [vmem:[%s3 + $0x58] sm:$0xff]
        %v1248 = vld [vmem:[%s3 + $0x60] sm:$0xff]
        %v1249 = vld [vmem:[%s3 + $0x68] sm:$0xff]
        %v1250 = vld [vmem:[%s3 + $0x70] sm:$0xff]
        %v1251 = vld [vmem:[%s3 + $0x78] sm:$0xff]
        %v1252 = vld [vmem:[%s4] sm:$0x1]
        %v1254 = vlaneseq
        %v1255 = vshrl.u32 %v1254, 7
        %v1256 = vsub.s32 0, %v1255
        %v1257 = vrot.slane %v1252, %v1256
        %1259 = vmatprep.subr.mxu0 0.0
        %1260 = vmatpush1.msra.mxu0 %v1236
        %1261 = vmatprep.subr.mxu0 0.0
        %1262 = vmatpush1.msra.mxu0 %v1237
        %1263 = vmatprep.subr.mxu0 0.0
        %1264 = vmatpush1.msra.mxu0 %v1238
        %1265 = vmatprep.subr.mxu0 0.0
        %1266 = vmatpush1.msra.mxu0 %v1239
        %1267 = vmatprep.subr.mxu0 0.0
        %1268 = vmatpush1.msra.mxu0 %v1240
        %1269 = vmatprep.subr.mxu0 0.0
        %1270 = vmatpush1.msra.mxu0 %v1241
        %1271 = vmatprep.subr.mxu0 0.0
        %1272 = vmatpush1.msra.mxu0 %v1242
        %1273 = vmatprep.subr.mxu0 0.0
        %1274 = vmatpush1.msra.mxu0 %v1243
        %1275 = vmatprep.subr.mxu0 0.0
        %1276 = vmatpush1.msra.mxu0 %v1244
        %1277 = vmatprep.subr.mxu0 0.0
        %1278 = vmatpush1.msra.mxu0 %v1245
        %1279 = vmatprep.subr.mxu0 0.0
        %1280 = vmatpush1.msra.mxu0 %v1246
        %1281 = vmatprep.subr.mxu0 0.0
        %1282 = vmatpush1.msra.mxu0 %v1247
        %1283 = vmatprep.subr.mxu0 0.0
        %1284 = vmatpush1.msra.mxu0 %v1248
        %1285 = vmatprep.subr.mxu0 0.0
        %1286 = vmatpush1.msra.mxu0 %v1249
        %1287 = vmatprep.subr.mxu0 0.0
        %1288 = vmatpush1.msra.mxu0 %v1250
        %1289 = vmatprep.subr.mxu0 0.0
        %1290 = vmatpush1.msra.mxu0 %v1251
        %1291 = vmatprep.subr.mxu0 0.0
        %1292 = vmatpush1.msra.mxu0 0.0
        %1293 = vmatprep.subr.mxu0 0.0
        %1294 = vmatpush1.msra.mxu0 0.0
        %1295 = vmatprep.subr.mxu0 0.0
        %1296 = vmatpush1.msra.mxu0 0.0
        %1297 = vmatprep.subr.mxu0 0.0
        %1298 = vmatpush1.msra.mxu0 0.0
        %1299 = vmatprep.subr.mxu0 0.0
        %1300 = vmatpush1.msra.mxu0 0.0
        %1301 = vmatprep.subr.mxu0 0.0
        %1302 = vmatpush1.msra.mxu0 0.0
        %1303 = vmatprep.subr.mxu0 0.0
        %1304 = vmatpush1.msra.mxu0 0.0
        %1305 = vmatprep.subr.mxu0 0.0
        %1306 = vmatpush1.msra.mxu0 0.0
        %1307 = vmatprep.subr.mxu0 0.0
        %1308 = vmatpush1.msra.mxu0 0.0
        %1309 = vmatprep.subr.mxu0 0.0
        %1310 = vmatpush1.msra.mxu0 0.0
        %1311 = vmatprep.subr.mxu0 0.0
        %1312 = vmatpush1.msra.mxu0 0.0
        %1313 = vmatprep.subr.mxu0 0.0
        %1314 = vmatpush1.msra.mxu0 0.0
        %1315 = vmatprep.subr.mxu0 0.0
        %1316 = vmatpush1.msra.mxu0 0.0
        %1317 = vmatprep.subr.mxu0 0.0
        %1318 = vmatpush1.msra.mxu0 0.0
        %1319 = vmatprep.subr.mxu0 0.0
        %1320 = vmatpush1.msra.mxu0 0.0
        %1321 = vmatprep.subr.mxu0 0.0
        %1322 = vmatpush1.msra.mxu0 0.0
        %1323 = vmatprep.mubr.f32.mxu0 0.0
        %1324 = vmatmul.mubr.f32.gmra.mrb[0].mxu0 %v1220
        %v1325 = vpop.f32.mrb[0].mxu0
        %v1326 = vadd.f32 %v1257, %v1325
        %v1327 = vpop.f32.mrb[0].mxu0
        %1328 = vmatprep.mubr.f32.mxu0 0.0
        %1329 = vmatmul.mubr.f32.gmra.mrb[0].mxu0 %v1221
        %v1330 = vpop.f32.mrb[0].mxu0
        %v1331 = vadd.f32 %v1257, %v1330
        %v1332 = vpop.f32.mrb[0].mxu0
        %1333 = vmatprep.mubr.f32.mxu0 0.0
        %1334 = vmatmul.mubr.f32.gmra.mrb[0].mxu0 %v1222
        %v1335 = vpop.f32.mrb[0].mxu0
        %v1336 = vadd.f32 %v1257, %v1335
        %v1337 = vpop.f32.mrb[0].mxu0
        %1338 = vmatprep.mubr.f32.mxu0 0.0
        %1339 = vmatmul.mubr.f32.gmra.mrb[0].mxu0 %v1223
        %v1340 = vpop.f32.mrb[0].mxu0
        %v1341 = vadd.f32 %v1257, %v1340
        %v1342 = vpop.f32.mrb[0].mxu0
        %1343 = vmatprep.mubr.f32.mxu0 0.0
        %1344 = vmatmul.mubr.f32.gmra.mrb[0].mxu0 %v1224
        %v1345 = vpop.f32.mrb[0].mxu0
        %v1346 = vadd.f32 %v1257, %v1345
        %v1347 = vpop.f32.mrb[0].mxu0
        %1348 = vmatprep.mubr.f32.mxu0 0.0
        %1349 = vmatmul.mubr.f32.gmra.mrb[0].mxu0 %v1225
        %v1350 = vpop.f32.mrb[0].mxu0
        %v1351 = vadd.f32 %v1257, %v1350
        %v1352 = vpop.f32.mrb[0].mxu0
        %1353 = vmatprep.mubr.f32.mxu0 0.0
        %1354 = vmatmul.mubr.f32.gmra.mrb[0].mxu0 %v1226
        %v1355 = vpop.f32.mrb[0].mxu0
        %v1356 = vadd.f32 %v1257, %v1355
        %v1357 = vpop.f32.mrb[0].mxu0
        %1358 = vmatprep.mubr.f32.mxu0 0.0
        %1359 = vmatmul.mubr.f32.gmra.mrb[0].mxu0 %v1227
        %v1360 = vpop.f32.mrb[0].mxu0
        %v1361 = vadd.f32 %v1257, %v1360
        %v1362 = vpop.f32.mrb[0].mxu0
        %1363 = vmatprep.mubr.f32.mxu0 0.0
        %1364 = vmatmul.mubr.f32.gmra.mrb[0].mxu0 %v1228
        %v1365 = vpop.f32.mrb[0].mxu0
        %v1366 = vadd.f32 %v1257, %v1365
        %v1367 = vpop.f32.mrb[0].mxu0
        %1368 = vmatprep.mubr.f32.mxu0 0.0
        %1369 = vmatmul.mubr.f32.gmra.mrb[0].mxu0 %v1229
        %v1370 = vpop.f32.mrb[0].mxu0
        %v1371 = vadd.f32 %v1257, %v1370
        %v1372 = vpop.f32.mrb[0].mxu0
        %1373 = vmatprep.mubr.f32.mxu0 0.0
        %1374 = vmatmul.mubr.f32.gmra.mrb[0].mxu0 %v1230
        %v1375 = vpop.f32.mrb[0].mxu0
        %v1376 = vadd.f32 %v1257, %v1375
        %v1377 = vpop.f32.mrb[0].mxu0
        %1378 = vmatprep.mubr.f32.mxu0 0.0
        %1379 = vmatmul.mubr.f32.gmra.mrb[0].mxu0 %v1231
        %v1380 = vpop.f32.mrb[0].mxu0
        %v1381 = vadd.f32 %v1257, %v1380
        %v1382 = vpop.f32.mrb[0].mxu0
        %1383 = vmatprep.mubr.f32.mxu0 0.0
        %1384 = vmatmul.mubr.f32.gmra.mrb[0].mxu0 %v1232
        %v1385 = vpop.f32.mrb[0].mxu0
        %v1386 = vadd.f32 %v1257, %v1385
        %v1387 = vpop.f32.mrb[0].mxu0
        %1388 = vmatprep.mubr.f32.mxu0 0.0
        %1389 = vmatmul.mubr.f32.gmra.mrb[0].mxu0 %v1233
        %v1390 = vpop.f32.mrb[0].mxu0
        %v1391 = vadd.f32 %v1257, %v1390
        %v1392 = vpop.f32.mrb[0].mxu0
        %1393 = vmatprep.mubr.f32.mxu0 0.0
        %1394 = vmatmul.mubr.f32.gmra.mrb[0].mxu0 %v1234
        %v1395 = vpop.f32.mrb[0].mxu0
        %v1396 = vadd.f32 %v1257, %v1395
        %v1397 = vpop.f32.mrb[0].mxu0
        %1398 = vmatprep.mubr.f32.mxu0 0.0
        %1399 = vmatmul.mubr.f32.gmra.mrb[0].mxu0 %v1235
        %v1400 = vpop.f32.mrb[0].mxu0
        %v1401 = vadd.f32 %v1257, %v1400
        %v1402 = vpop.f32.mrb[0].mxu0
        %1403 = vdwg.mxu0
        %v1404 = vmax.f32 %v1326, 0.0
        %v1405 = vmax.f32 %v1331, 0.0
        %v1406 = vmax.f32 %v1336, 0.0
        %v1407 = vmax.f32 %v1341, 0.0
        %v1408 = vmax.f32 %v1346, 0.0
        %v1409 = vmax.f32 %v1351, 0.0
        %v1410 = vmax.f32 %v1356, 0.0
        %v1411 = vmax.f32 %v1361, 0.0
        %v1412 = vmax.f32 %v1366, 0.0
        %v1413 = vmax.f32 %v1371, 0.0
        %v1414 = vmax.f32 %v1376, 0.0
        %v1415 = vmax.f32 %v1381, 0.0
        %v1416 = vmax.f32 %v1386, 0.0
        %v1417 = vmax.f32 %v1391, 0.0
        %v1418 = vmax.f32 %v1396, 0.0
        %v1419 = vmax.f32 %v1401, 0.0
        %v1420 = vld [vmem:[%s5] sm:$0xff]
        %v1421 = vld [vmem:[%s5 + $0x8] sm:$0xff]
        %v1422 = vld [vmem:[%s5 + $0x10] sm:$0xff]
        %v1423 = vld [vmem:[%s5 + $0x18] sm:$0xff]
        %v1424 = vld [vmem:[%s5 + $0x20] sm:$0xff]
        %v1425 = vld [vmem:[%s5 + $0x28] sm:$0xff]
        %v1426 = vld [vmem:[%s5 + $0x30] sm:$0xff]
        %v1427 = vld [vmem:[%s5 + $0x38] sm:$0xff]
        %v1428 = vld [vmem:[%s6] sm:$0x1]
        %v1430 = vlaneseq
        %v1431 = vshrl.u32 %v1430, 7
        %v1432 = vsub.s32 0, %v1431
        %v1433 = vrot.slane %v1428, %v1432
        %vm1435 = vcmask 523264
        %v1437 = vsel %vm1435, %v1404, 0
        %v1440 = vsel %vm1435, %v1405, 0
        %v1443 = vsel %vm1435, %v1406, 0
        %v1446 = vsel %vm1435, %v1407, 0
        %v1449 = vsel %vm1435, %v1408, 0
        %v1452 = vsel %vm1435, %v1409, 0
        %v1455 = vsel %vm1435, %v1410, 0
        %v1458 = vsel %vm1435, %v1411, 0
        %v1461 = vsel %vm1435, %v1412, 0
        %v1464 = vsel %vm1435, %v1413, 0
        %v1467 = vsel %vm1435, %v1414, 0
        %v1470 = vsel %vm1435, %v1415, 0
        %v1473 = vsel %vm1435, %v1416, 0
        %v1476 = vsel %vm1435, %v1417, 0
        %v1479 = vsel %vm1435, %v1418, 0
        %v1482 = vsel %vm1435, %v1419, 0
        %1484 = vmatprep.subr.mxu0 0.0
        %1485 = vmatpush1.msra.mxu0 %v1420
        %1486 = vmatprep.subr.mxu0 0.0
        %1487 = vmatpush1.msra.mxu0 %v1421
        %1488 = vmatprep.subr.mxu0 0.0
        %1489 = vmatpush1.msra.mxu0 %v1422
        %1490 = vmatprep.subr.mxu0 0.0
        %1491 = vmatpush1.msra.mxu0 %v1423
        %1492 = vmatprep.subr.mxu0 0.0
        %1493 = vmatpush1.msra.mxu0 %v1424
        %1494 = vmatprep.subr.mxu0 0.0
        %1495 = vmatpush1.msra.mxu0 %v1425
        %1496 = vmatprep.subr.mxu0 0.0
        %1497 = vmatpush1.msra.mxu0 %v1426
        %1498 = vmatprep.subr.mxu0 0.0
        %1499 = vmatpush1.msra.mxu0 %v1427
        %1500 = vmatprep.subr.mxu0 0.0
        %1501 = vmatpush1.msra.mxu0 0.0
        %1502 = vmatprep.subr.mxu0 0.0
        %1503 = vmatpush1.msra.mxu0 0.0
        %1504 = vmatprep.subr.mxu0 0.0
        %1505 = vmatpush1.msra.mxu0 0.0
        %1506 = vmatprep.subr.mxu0 0.0
        %1507 = vmatpush1.msra.mxu0 0.0
        %1508 = vmatprep.subr.mxu0 0.0
        %1509 = vmatpush1.msra.mxu0 0.0
        %1510 = vmatprep.subr.mxu0 0.0
        %1511 = vmatpush1.msra.mxu0 0.0
        %1512 = vmatprep.subr.mxu0 0.0
        %1513 = vmatpush1.msra.mxu0 0.0
        %1514 = vmatprep.subr.mxu0 0.0
        %1515 = vmatpush1.msra.mxu0 0.0
        %1516 = vmatprep.subr.mxu0 0.0
        %1517 = vmatpush1.msra.mxu0 0.0
        %1518 = vmatprep.subr.mxu0 0.0
        %1519 = vmatpush1.msra.mxu0 0.0
        %1520 = vmatprep.subr.mxu0 0.0
        %1521 = vmatpush1.msra.mxu0 0.0
        %1522 = vmatprep.subr.mxu0 0.0
        %1523 = vmatpush1.msra.mxu0 0.0
        %1524 = vmatprep.subr.mxu0 0.0
        %1525 = vmatpush1.msra.mxu0 0.0
        %1526 = vmatprep.subr.mxu0 0.0
        %1527 = vmatpush1.msra.mxu0 0.0
        %1528 = vmatprep.subr.mxu0 0.0
        %1529 = vmatpush1.msra.mxu0 0.0
        %1530 = vmatprep.subr.mxu0 0.0
        %1531 = vmatpush1.msra.mxu0 0.0
        %1532 = vmatprep.subr.mxu0 0.0
        %1533 = vmatpush1.msra.mxu0 0.0
        %1534 = vmatprep.subr.mxu0 0.0
        %1535 = vmatpush1.msra.mxu0 0.0
        %1536 = vmatprep.subr.mxu0 0.0
        %1537 = vmatpush1.msra.mxu0 0.0
        %1538 = vmatprep.subr.mxu0 0.0
        %1539 = vmatpush1.msra.mxu0 0.0
        %1540 = vmatprep.subr.mxu0 0.0
        %1541 = vmatpush1.msra.mxu0 0.0
        %1542 = vmatprep.subr.mxu0 0.0
        %1543 = vmatpush1.msra.mxu0 0.0
        %1544 = vmatprep.subr.mxu0 0.0
        %1545 = vmatpush1.msra.mxu0 0.0
        %1546 = vmatprep.subr.mxu0 0.0
        %1547 = vmatpush1.msra.mxu0 0.0
        %1548 = vmatprep.mubr.f32.mxu0 0.0
        %1549 = vmatmul.mubr.f32.gmra.mrb[0].mxu0 %v1437
        %v1550 = vpop.f32.mrb[0].mxu0
        %v1551 = vadd.f32 %v1433, %v1550
        %v1552 = vpop.f32.mrb[0].mxu0
        %1553 = vmatprep.mubr.f32.mxu0 0.0
        %1554 = vmatmul.mubr.f32.gmra.mrb[0].mxu0 %v1440
        %v1555 = vpop.f32.mrb[0].mxu0
        %v1556 = vadd.f32 %v1433, %v1555
        %v1557 = vpop.f32.mrb[0].mxu0
        %1558 = vmatprep.mubr.f32.mxu0 0.0
        %1559 = vmatmul.mubr.f32.gmra.mrb[0].mxu0 %v1443
        %v1560 = vpop.f32.mrb[0].mxu0
        %v1561 = vadd.f32 %v1433, %v1560
        %v1562 = vpop.f32.mrb[0].mxu0
        %1563 = vmatprep.mubr.f32.mxu0 0.0
        %1564 = vmatmul.mubr.f32.gmra.mrb[0].mxu0 %v1446
        %v1565 = vpop.f32.mrb[0].mxu0
        %v1566 = vadd.f32 %v1433, %v1565
        %v1567 = vpop.f32.mrb[0].mxu0
        %1568 = vmatprep.mubr.f32.mxu0 0.0
        %1569 = vmatmul.mubr.f32.gmra.mrb[0].mxu0 %v1449
        %v1570 = vpop.f32.mrb[0].mxu0
        %v1571 = vadd.f32 %v1433, %v1570
        %v1572 = vpop.f32.mrb[0].mxu0
        %1573 = vmatprep.mubr.f32.mxu0 0.0
        %1574 = vmatmul.mubr.f32.gmra.mrb[0].mxu0 %v1452
        %v1575 = vpop.f32.mrb[0].mxu0
        %v1576 = vadd.f32 %v1433, %v1575
        %v1577 = vpop.f32.mrb[0].mxu0
        %1578 = vmatprep.mubr.f32.mxu0 0.0
        %1579 = vmatmul.mubr.f32.gmra.mrb[0].mxu0 %v1455
        %v1580 = vpop.f32.mrb[0].mxu0
        %v1581 = vadd.f32 %v1433, %v1580
        %v1582 = vpop.f32.mrb[0].mxu0
        %1583 = vmatprep.mubr.f32.mxu0 0.0
        %1584 = vmatmul.mubr.f32.gmra.mrb[0].mxu0 %v1458
        %v1585 = vpop.f32.mrb[0].mxu0
        %v1586 = vadd.f32 %v1433, %v1585
        %v1587 = vpop.f32.mrb[0].mxu0
        %1588 = vmatprep.mubr.f32.mxu0 0.0
        %1589 = vmatmul.mubr.f32.gmra.mrb[0].mxu0 %v1461
        %v1590 = vpop.f32.mrb[0].mxu0
        %v1591 = vadd.f32 %v1433, %v1590
        %v1592 = vpop.f32.mrb[0].mxu0
        %1593 = vmatprep.mubr.f32.mxu0 0.0
        %1594 = vmatmul.mubr.f32.gmra.mrb[0].mxu0 %v1464
        %v1595 = vpop.f32.mrb[0].mxu0
        %v1596 = vadd.f32 %v1433, %v1595
        %v1597 = vpop.f32.mrb[0].mxu0
        %1598 = vmatprep.mubr.f32.mxu0 0.0
        %1599 = vmatmul.mubr.f32.gmra.mrb[0].mxu0 %v1467
        %v1600 = vpop.f32.mrb[0].mxu0
        %v1601 = vadd.f32 %v1433, %v1600
        %v1602 = vpop.f32.mrb[0].mxu0
        %1603 = vmatprep.mubr.f32.mxu0 0.0
        %1604 = vmatmul.mubr.f32.gmra.mrb[0].mxu0 %v1470
        %v1605 = vpop.f32.mrb[0].mxu0
        %v1606 = vadd.f32 %v1433, %v1605
        %v1607 = vpop.f32.mrb[0].mxu0
        %1608 = vmatprep.mubr.f32.mxu0 0.0
        %1609 = vmatmul.mubr.f32.gmra.mrb[0].mxu0 %v1473
        %v1610 = vpop.f32.mrb[0].mxu0
        %v1611 = vadd.f32 %v1433, %v1610
        %v1612 = vpop.f32.mrb[0].mxu0
        %1613 = vmatprep.mubr.f32.mxu0 0.0
        %1614 = vmatmul.mubr.f32.gmra.mrb[0].mxu0 %v1476
        %v1615 = vpop.f32.mrb[0].mxu0
        %v1616 = vadd.f32 %v1433, %v1615
        %v1617 = vpop.f32.mrb[0].mxu0
        %1618 = vmatprep.mubr.f32.mxu0 0.0
        %1619 = vmatmul.mubr.f32.gmra.mrb[0].mxu0 %v1479
        %v1620 = vpop.f32.mrb[0].mxu0
        %v1621 = vadd.f32 %v1433, %v1620
        %v1622 = vpop.f32.mrb[0].mxu0
        %1623 = vmatprep.mubr.f32.mxu0 0.0
        %1624 = vmatmul.mubr.f32.gmra.mrb[0].mxu0 %v1482
        %v1625 = vpop.f32.mrb[0].mxu0
        %v1626 = vadd.f32 %v1433, %v1625
        %v1627 = vpop.f32.mrb[0].mxu0
        %1628 = vdwg.mxu0
        %1629 = vst [vmem:[%s359] sm:$0xff] %v1551
        %1630 = vst [vmem:[%s359 + $0x8] sm:$0xff] %v1556
        %1631 = vst [vmem:[%s359 + $0x10] sm:$0xff] %v1561
        %1632 = vst [vmem:[%s359 + $0x18] sm:$0xff] %v1566
        %1633 = vst [vmem:[%s359 + $0x20] sm:$0xff] %v1571
        %1634 = vst [vmem:[%s359 + $0x28] sm:$0xff] %v1576
        %1635 = vst [vmem:[%s359 + $0x30] sm:$0xff] %v1581
        %1636 = vst [vmem:[%s359 + $0x38] sm:$0xff] %v1586
        %1637 = vst [vmem:[%s359 + $0x40] sm:$0xff] %v1591
        %1638 = vst [vmem:[%s359 + $0x48] sm:$0xff] %v1596
        %1639 = vst [vmem:[%s359 + $0x50] sm:$0xff] %v1601
        %1640 = vst [vmem:[%s359 + $0x58] sm:$0xff] %v1606
        %1641 = vst [vmem:[%s359 + $0x60] sm:$0xff] %v1611
        %1642 = vst [vmem:[%s359 + $0x68] sm:$0xff] %v1616
        %1643 = vst [vmem:[%s359 + $0x70] sm:$0xff] %v1621
        %1644 = vst [vmem:[%s359 + $0x78] sm:$0xff] %v1626
        %v1645 = vld [vmem:[%s7] sm:$0xff]
        %v1646 = vld [vmem:[%s7 + $0x8] sm:$0xff]
        %v1647 = vld [vmem:[%s7 + $0x10] sm:$0xff]
        %v1648 = vld [vmem:[%s7 + $0x18] sm:$0xff]
        %v1649 = vld [vmem:[%s7 + $0x20] sm:$0xff]
        %v1650 = vld [vmem:[%s7 + $0x28] sm:$0xff]
        %v1651 = vld [vmem:[%s7 + $0x30] sm:$0xff]
        %v1652 = vld [vmem:[%s7 + $0x38] sm:$0xff]
        %v1653 = vld [vmem:[%s7 + $0x40] sm:$0xff]
        %v1654 = vld [vmem:[%s7 + $0x48] sm:$0xff]
        %v1655 = vld [vmem:[%s7 + $0x50] sm:$0xff]
        %v1656 = vld [vmem:[%s7 + $0x58] sm:$0xff]
        %v1657 = vld [vmem:[%s7 + $0x60] sm:$0xff]
        %v1658 = vld [vmem:[%s7 + $0x68] sm:$0xff]
        %v1659 = vld [vmem:[%s7 + $0x70] sm:$0xff]
        %v1660 = vld [vmem:[%s7 + $0x78] sm:$0xff]
        %v1661 = vld [vmem:[%s8] sm:$0xff]
        %v1662 = vld [vmem:[%s8 + $0x8] sm:$0xff]
        %v1663 = vld [vmem:[%s8 + $0x10] sm:$0xff]
        %v1664 = vld [vmem:[%s8 + $0x18] sm:$0xff]
        %v1665 = vld [vmem:[%s8 + $0x20] sm:$0xff]
        %v1666 = vld [vmem:[%s8 + $0x28] sm:$0xff]
        %v1667 = vld [vmem:[%s8 + $0x30] sm:$0xff]
        %v1668 = vld [vmem:[%s8 + $0x38] sm:$0xff]
        %v1669 = vld [vmem:[%s8 + $0x40] sm:$0xff]
        %v1670 = vld [vmem:[%s8 + $0x48] sm:$0xff]
        %v1671 = vld [vmem:[%s8 + $0x50] sm:$0xff]
        %v1672 = vld [vmem:[%s8 + $0x58] sm:$0xff]
        %v1673 = vld [vmem:[%s8 + $0x60] sm:$0xff]
        %v1674 = vld [vmem:[%s8 + $0x68] sm:$0xff]
        %v1675 = vld [vmem:[%s8 + $0x70] sm:$0xff]
        %v1676 = vld [vmem:[%s8 + $0x78] sm:$0xff]
        %1678 = vset.pattern.permute.xlu0 0
        %1679 = vperm.xlu0 %1678, %v1661
        %v1680 = vpop.permute.xlu0 %1679
        %1683 = vset.pattern.permute.xlu0 0
        %1684 = vperm.xlu0 %1683, %v1662
        %v1685 = vpop.permute.xlu0 %1684
        %1688 = vset.pattern.permute.xlu0 0
        %1689 = vperm.xlu0 %1688, %v1663
        %v1690 = vpop.permute.xlu0 %1689
        %1693 = vset.pattern.permute.xlu0 0
        %1694 = vperm.xlu0 %1693, %v1664
        %v1695 = vpop.permute.xlu0 %1694
        %1698 = vset.pattern.permute.xlu0 0
        %1699 = vperm.xlu0 %1698, %v1665
        %v1700 = vpop.permute.xlu0 %1699
        %1703 = vset.pattern.permute.xlu0 0
        %1704 = vperm.xlu0 %1703, %v1666
        %v1705 = vpop.permute.xlu0 %1704
        %1708 = vset.pattern.permute.xlu0 0
        %1709 = vperm.xlu0 %1708, %v1667
        %v1710 = vpop.permute.xlu0 %1709
        %1713 = vset.pattern.permute.xlu0 0
        %1714 = vperm.xlu0 %1713, %v1668
        %v1715 = vpop.permute.xlu0 %1714
        %1718 = vset.pattern.permute.xlu0 0
        %1719 = vperm.xlu0 %1718, %v1669
        %v1720 = vpop.permute.xlu0 %1719
        %1723 = vset.pattern.permute.xlu0 0
        %1724 = vperm.xlu0 %1723, %v1670
        %v1725 = vpop.permute.xlu0 %1724
        %1728 = vset.pattern.permute.xlu0 0
        %1729 = vperm.xlu0 %1728, %v1671
        %v1730 = vpop.permute.xlu0 %1729
        %1733 = vset.pattern.permute.xlu0 0
        %1734 = vperm.xlu0 %1733, %v1672
        %v1735 = vpop.permute.xlu0 %1734
        %1738 = vset.pattern.permute.xlu0 0
        %1739 = vperm.xlu0 %1738, %v1673
        %v1740 = vpop.permute.xlu0 %1739
        %1743 = vset.pattern.permute.xlu0 0
        %1744 = vperm.xlu0 %1743, %v1674
        %v1745 = vpop.permute.xlu0 %1744
        %1748 = vset.pattern.permute.xlu0 0
        %1749 = vperm.xlu0 %1748, %v1675
        %v1750 = vpop.permute.xlu0 %1749
        %1753 = vset.pattern.permute.xlu0 0
        %1754 = vperm.xlu0 %1753, %v1676
        %v1755 = vpop.permute.xlu0 %1754
        %v1758 = vsel %vm1435, %v1645, 0
        %v1761 = vsel %vm1435, %v1646, 0
        %v1764 = vsel %vm1435, %v1647, 0
        %v1767 = vsel %vm1435, %v1648, 0
        %v1770 = vsel %vm1435, %v1649, 0
        %v1773 = vsel %vm1435, %v1650, 0
        %v1776 = vsel %vm1435, %v1651, 0
        %v1779 = vsel %vm1435, %v1652, 0
        %v1782 = vsel %vm1435, %v1653, 0
        %v1785 = vsel %vm1435, %v1654, 0
        %v1788 = vsel %vm1435, %v1655, 0
        %v1791 = vsel %vm1435, %v1656, 0
        %v1794 = vsel %vm1435, %v1657, 0
        %v1797 = vsel %vm1435, %v1658, 0
        %v1800 = vsel %vm1435, %v1659, 0
        %v1803 = vsel %vm1435, %v1660, 0
        %1805 = vmatprep.subr.mxu0 0.0
        %1806 = vmatpush1.xpose.msra.mxu0 %v1437
        %1807 = vmatprep.subr.mxu0 0.0
        %1808 = vmatpush1.xpose.msra.mxu0 %v1440
        %1809 = vmatprep.subr.mxu0 0.0
        %1810 = vmatpush1.xpose.msra.mxu0 %v1443
        %1811 = vmatprep.subr.mxu0 0.0
        %1812 = vmatpush1.xpose.msra.mxu0 %v1446
        %1813 = vmatprep.subr.mxu0 0.0
        %1814 = vmatpush1.xpose.msra.mxu0 %v1449
        %1815 = vmatprep.subr.mxu0 0.0
        %1816 = vmatpush1.xpose.msra.mxu0 %v1452
        %1817 = vmatprep.subr.mxu0 0.0
        %1818 = vmatpush1.xpose.msra.mxu0 %v1455
        %1819 = vmatprep.subr.mxu0 0.0
        %1820 = vmatpush1.xpose.msra.mxu0 %v1458
        %1821 = vmatprep.subr.mxu0 0.0
        %1822 = vmatpush1.xpose.msra.mxu0 %v1461
        %1823 = vmatprep.subr.mxu0 0.0
        %1824 = vmatpush1.xpose.msra.mxu0 %v1464
        %1825 = vmatprep.subr.mxu0 0.0
        %1826 = vmatpush1.xpose.msra.mxu0 %v1467
        %1827 = vmatprep.subr.mxu0 0.0
        %1828 = vmatpush1.xpose.msra.mxu0 %v1470
        %1829 = vmatprep.subr.mxu0 0.0
        %1830 = vmatpush1.xpose.msra.mxu0 %v1473
        %1831 = vmatprep.subr.mxu0 0.0
        %1832 = vmatpush1.xpose.msra.mxu0 %v1476
        %1833 = vmatprep.subr.mxu0 0.0
        %1834 = vmatpush1.xpose.msra.mxu0 %v1479
        %1835 = vmatprep.subr.mxu0 0.0
        %1836 = vmatpush1.xpose.msra.mxu0 %v1482
        %1837 = vmatprep.subr.mxu0 0.0
        %1838 = vmatpush1.xpose.msra.mxu0 0.0
        %1839 = vmatprep.subr.mxu0 0.0
        %1840 = vmatpush1.xpose.msra.mxu0 0.0
        %1841 = vmatprep.subr.mxu0 0.0
        %1842 = vmatpush1.xpose.msra.mxu0 0.0
        %1843 = vmatprep.subr.mxu0 0.0
        %1844 = vmatpush1.xpose.msra.mxu0 0.0
        %1845 = vmatprep.subr.mxu0 0.0
        %1846 = vmatpush1.xpose.msra.mxu0 0.0
        %1847 = vmatprep.subr.mxu0 0.0
        %1848 = vmatpush1.xpose.msra.mxu0 0.0
        %1849 = vmatprep.subr.mxu0 0.0
        %1850 = vmatpush1.xpose.msra.mxu0 0.0
        %1851 = vmatprep.subr.mxu0 0.0
        %1852 = vmatpush1.xpose.msra.mxu0 0.0
        %1853 = vmatprep.subr.mxu0 0.0
        %1854 = vmatpush1.xpose.msra.mxu0 0.0
        %1855 = vmatprep.subr.mxu0 0.0
        %1856 = vmatpush1.xpose.msra.mxu0 0.0
        %1857 = vmatprep.subr.mxu0 0.0
        %1858 = vmatpush1.xpose.msra.mxu0 0.0
        %1859 = vmatprep.subr.mxu0 0.0
        %1860 = vmatpush1.xpose.msra.mxu0 0.0
        %1861 = vmatprep.subr.mxu0 0.0
        %1862 = vmatpush1.xpose.msra.mxu0 0.0
        %1863 = vmatprep.subr.mxu0 0.0
        %1864 = vmatpush1.xpose.msra.mxu0 0.0
        %1865 = vmatprep.subr.mxu0 0.0
        %1866 = vmatpush1.xpose.msra.mxu0 0.0
        %1867 = vmatprep.subr.mxu0 0.0
        %1868 = vmatpush1.xpose.msra.mxu0 0.0
        %1869 = vmatprep.mubr.f32.mxu0 0.0
        %1870 = vmatmul.mubr.f32.gmra.mrb[0].mxu0 %v1758
        %v1871 = vpop.f32.mrb[0].mxu0
        %v1872 = vadd.f32 %v1680, %v1871
        %v1873 = vpop.f32.mrb[0].mxu0
        %1874 = vmatprep.mubr.f32.mxu0 0.0
        %1875 = vmatmul.mubr.f32.gmra.mrb[0].mxu0 %v1761
        %v1876 = vpop.f32.mrb[0].mxu0
        %v1877 = vadd.f32 %v1685, %v1876
        %v1878 = vpop.f32.mrb[0].mxu0
        %1879 = vmatprep.mubr.f32.mxu0 0.0
        %1880 = vmatmul.mubr.f32.gmra.mrb[0].mxu0 %v1764
        %v1881 = vpop.f32.mrb[0].mxu0
        %v1882 = vadd.f32 %v1690, %v1881
        %v1883 = vpop.f32.mrb[0].mxu0
        %1884 = vmatprep.mubr.f32.mxu0 0.0
        %1885 = vmatmul.mubr.f32.gmra.mrb[0].mxu0 %v1767
        %v1886 = vpop.f32.mrb[0].mxu0
        %v1887 = vadd.f32 %v1695, %v1886
        %v1888 = vpop.f32.mrb[0].mxu0
        %1889 = vmatprep.mubr.f32.mxu0 0.0
        %1890 = vmatmul.mubr.f32.gmra.mrb[0].mxu0 %v1770
        %v1891 = vpop.f32.mrb[0].mxu0
        %v1892 = vadd.f32 %v1700, %v1891
        %v1893 = vpop.f32.mrb[0].mxu0
        %1894 = vmatprep.mubr.f32.mxu0 0.0
        %1895 = vmatmul.mubr.f32.gmra.mrb[0].mxu0 %v1773
        %v1896 = vpop.f32.mrb[0].mxu0
        %v1897 = vadd.f32 %v1705, %v1896
        %v1898 = vpop.f32.mrb[0].mxu0
        %1899 = vmatprep.mubr.f32.mxu0 0.0
        %1900 = vmatmul.mubr.f32.gmra.mrb[0].mxu0 %v1776
        %v1901 = vpop.f32.mrb[0].mxu0
        %v1902 = vadd.f32 %v1710, %v1901
        %v1903 = vpop.f32.mrb[0].mxu0
        %1904 = vmatprep.mubr.f32.mxu0 0.0
        %1905 = vmatmul.mubr.f32.gmra.mrb[0].mxu0 %v1779
        %v1906 = vpop.f32.mrb[0].mxu0
        %v1907 = vadd.f32 %v1715, %v1906
        %v1908 = vpop.f32.mrb[0].mxu0
        %1909 = vmatprep.mubr.f32.mxu0 0.0
        %1910 = vmatmul.mubr.f32.gmra.mrb[0].mxu0 %v1782
        %v1911 = vpop.f32.mrb[0].mxu0
        %v1912 = vadd.f32 %v1720, %v1911
        %v1913 = vpop.f32.mrb[0].mxu0
        %1914 = vmatprep.mubr.f32.mxu0 0.0
        %1915 = vmatmul.mubr.f32.gmra.mrb[0].mxu0 %v1785
        %v1916 = vpop.f32.mrb[0].mxu0
        %v1917 = vadd.f32 %v1725, %v1916
        %v1918 = vpop.f32.mrb[0].mxu0
        %1919 = vmatprep.mubr.f32.mxu0 0.0
        %1920 = vmatmul.mubr.f32.gmra.mrb[0].mxu0 %v1788
        %v1921 = vpop.f32.mrb[0].mxu0
        %v1922 = vadd.f32 %v1730, %v1921
        %v1923 = vpop.f32.mrb[0].mxu0
        %1924 = vmatprep.mubr.f32.mxu0 0.0
        %1925 = vmatmul.mubr.f32.gmra.mrb[0].mxu0 %v1791
        %v1926 = vpop.f32.mrb[0].mxu0
        %v1927 = vadd.f32 %v1735, %v1926
        %v1928 = vpop.f32.mrb[0].mxu0
        %1929 = vmatprep.mubr.f32.mxu0 0.0
        %1930 = vmatmul.mubr.f32.gmra.mrb[0].mxu0 %v1794
        %v1931 = vpop.f32.mrb[0].mxu0
        %v1932 = vadd.f32 %v1740, %v1931
        %v1933 = vpop.f32.mrb[0].mxu0
        %1934 = vmatprep.mubr.f32.mxu0 0.0
        %1935 = vmatmul.mubr.f32.gmra.mrb[0].mxu0 %v1797
        %v1936 = vpop.f32.mrb[0].mxu0
        %v1937 = vadd.f32 %v1745, %v1936
        %v1938 = vpop.f32.mrb[0].mxu0
        %1939 = vmatprep.mubr.f32.mxu0 0.0
        %1940 = vmatmul.mubr.f32.gmra.mrb[0].mxu0 %v1800
        %v1941 = vpop.f32.mrb[0].mxu0
        %v1942 = vadd.f32 %v1750, %v1941
        %v1943 = vpop.f32.mrb[0].mxu0
        %1944 = vmatprep.mubr.f32.mxu0 0.0
        %1945 = vmatmul.mubr.f32.gmra.mrb[0].mxu0 %v1803
        %v1946 = vpop.f32.mrb[0].mxu0
        %v1947 = vadd.f32 %v1755, %v1946
        %v1948 = vpop.f32.mrb[0].mxu0
        %1949 = vdwg.mxu0
        %v1950 = vmax.f32 %v1872, -25.0
        %v1951 = vmax.f32 %v1877, -25.0
        %v1952 = vmax.f32 %v1882, -25.0
        %v1953 = vmax.f32 %v1887, -25.0
        %v1954 = vmax.f32 %v1892, -25.0
        %v1955 = vmax.f32 %v1897, -25.0
        %v1956 = vmax.f32 %v1902, -25.0
        %v1957 = vmax.f32 %v1907, -25.0
        %v1958 = vmax.f32 %v1912, -25.0
        %v1959 = vmax.f32 %v1917, -25.0
        %v1960 = vmax.f32 %v1922, -25.0
        %v1961 = vmax.f32 %v1927, -25.0
        %v1962 = vmax.f32 %v1932, -25.0
        %v1963 = vmax.f32 %v1937, -25.0
        %v1964 = vmax.f32 %v1942, -25.0
        %v1965 = vmax.f32 %v1947, -25.0
        %v1966 = vmin.f32 %v1950, 25.0
        %v1967 = vmin.f32 %v1951, 25.0
        %v1968 = vmin.f32 %v1952, 25.0
        %v1969 = vmin.f32 %v1953, 25.0
        %v1970 = vmin.f32 %v1954, 25.0
        %v1971 = vmin.f32 %v1955, 25.0
        %v1972 = vmin.f32 %v1956, 25.0
        %v1973 = vmin.f32 %v1957, 25.0
        %v1974 = vmin.f32 %v1958, 25.0
        %v1975 = vmin.f32 %v1959, 25.0
        %v1976 = vmin.f32 %v1960, 25.0
        %v1977 = vmin.f32 %v1961, 25.0
        %v1978 = vmin.f32 %v1962, 25.0
        %v1979 = vmin.f32 %v1963, 25.0
        %v1980 = vmin.f32 %v1964, 25.0
        %v1981 = vmin.f32 %v1965, 25.0
        %v1982 = vlaneseq
        %v1983 = vshrl.u32 %v1982, 7
        %v1984 = vadd.s32 %v1983, 8
        %v1985 = vadd.s32 %v1983, 16
        %v1986 = vadd.s32 %v1983, 24
        %v1987 = vadd.s32 %v1983, 32
        %v1988 = vadd.s32 %v1983, 40
        %v1989 = vadd.s32 %v1983, 48
        %v1990 = vadd.s32 %v1983, 56
        %v1991 = vadd.s32 %v1983, 64
        %v1992 = vadd.s32 %v1983, 72
        %v1993 = vadd.s32 %v1983, 80
        %v1994 = vadd.s32 %v1983, 88
        %v1995 = vadd.s32 %v1983, 96
        %v1996 = vadd.s32 %v1983, 104
        %v1997 = vadd.s32 %v1983, 112
        %v1998 = vadd.s32 %v1983, 120
        %vm1999 = vcmp.lt.s32.totalorder %v1983, 10
        %vm2000 = vcmp.lt.s32.totalorder %v1984, 10
        %vm2001 = vcmp.lt.s32.totalorder %v1985, 10
        %vm2002 = vcmp.lt.s32.totalorder %v1986, 10
        %vm2003 = vcmp.lt.s32.totalorder %v1987, 10
        %vm2004 = vcmp.lt.s32.totalorder %v1988, 10
        %vm2005 = vcmp.lt.s32.totalorder %v1989, 10
        %vm2006 = vcmp.lt.s32.totalorder %v1990, 10
        %vm2007 = vcmp.lt.s32.totalorder %v1991, 10
        %vm2008 = vcmp.lt.s32.totalorder %v1992, 10
        %vm2009 = vcmp.lt.s32.totalorder %v1993, 10
        %vm2010 = vcmp.lt.s32.totalorder %v1994, 10
        %vm2011 = vcmp.lt.s32.totalorder %v1995, 10
        %vm2012 = vcmp.lt.s32.totalorder %v1996, 10
        %vm2013 = vcmp.lt.s32.totalorder %v1997, 10
        %vm2014 = vcmp.lt.s32.totalorder %v1998, 10
        %v2015 = vsel %vm1999, %v1966, -1e+30
        %v2016 = vsel %vm2000, %v1967, -1e+30
        %v2017 = vsel %vm2001, %v1968, -1e+30
        %v2018 = vsel %vm2002, %v1969, -1e+30
        %v2019 = vsel %vm2003, %v1970, -1e+30
        %v2020 = vsel %vm2004, %v1971, -1e+30
        %v2021 = vsel %vm2005, %v1972, -1e+30
        %v2022 = vsel %vm2006, %v1973, -1e+30
        %v2023 = vsel %vm2007, %v1974, -1e+30
        %v2024 = vsel %vm2008, %v1975, -1e+30
        %v2025 = vsel %vm2009, %v1976, -1e+30
        %v2026 = vsel %vm2010, %v1977, -1e+30
        %v2027 = vsel %vm2011, %v1978, -1e+30
        %v2028 = vsel %vm2012, %v1979, -1e+30
        %v2029 = vsel %vm2013, %v1980, -1e+30
        %v2030 = vsel %vm2014, %v1981, -1e+30
        %v2031 = vmax.f32 %v2015, %v2019
        %v2032 = vmax.f32 %v2016, %v2020
        %v2033 = vmax.f32 %v2017, %v2021
        %v2034 = vmax.f32 %v2018, %v2022
        %v2035 = vmax.f32 %v2031, %v2023
        %v2036 = vmax.f32 %v2032, %v2024
        %v2037 = vmax.f32 %v2033, %v2025
        %v2038 = vmax.f32 %v2034, %v2026
        %v2039 = vmax.f32 %v2035, %v2027
        %v2040 = vmax.f32 %v2036, %v2028
        %v2041 = vmax.f32 %v2037, %v2029
        %v2042 = vmax.f32 %v2038, %v2030
        %v2043 = vmax.f32 %v2039, %v2040
        %v2044 = vmax.f32 %v2041, %v2042
        %v2045 = vmax.f32 %v2043, %v2044
        %v2046 = vrot.slane %v2045, 4
        %v2047 = vmax.f32 %v2045, %v2046
        %v2048 = vrot.slane %v2047, 2
        %v2049 = vmax.f32 %v2047, %v2048
        %v2050 = vrot.slane %v2049, 1
        %v2051 = vmax.f32 %v2049, %v2050
        %v2052 = vsub.f32 %v2015, %v2051
        %v2053 = vsub.f32 %v2016, %v2051
        %v2054 = vsub.f32 %v2017, %v2051
        %v2055 = vsub.f32 %v2018, %v2051
        %v2056 = vsub.f32 %v2019, %v2051
        %v2057 = vsub.f32 %v2020, %v2051
        %v2058 = vsub.f32 %v2021, %v2051
        %v2059 = vsub.f32 %v2022, %v2051
        %v2060 = vsub.f32 %v2023, %v2051
        %v2061 = vsub.f32 %v2024, %v2051
        %v2062 = vsub.f32 %v2025, %v2051
        %v2063 = vsub.f32 %v2026, %v2051
        %v2064 = vsub.f32 %v2027, %v2051
        %v2065 = vsub.f32 %v2028, %v2051
        %v2066 = vsub.f32 %v2029, %v2051
        %v2067 = vsub.f32 %v2030, %v2051
        %v2068 = vmul.f32 %v2052, 1.442695
        %v2069 = vpow.pop %v2068
        %v2070 = vmul.f32 %v2053, 1.442695
        %v2071 = vpow.pop %v2070
        %v2072 = vmul.f32 %v2054, 1.442695
        %v2073 = vpow.pop %v2072
        %v2074 = vmul.f32 %v2055, 1.442695
        %v2075 = vpow.pop %v2074
        %v2076 = vmul.f32 %v2056, 1.442695
        %v2077 = vpow.pop %v2076
        %v2078 = vmul.f32 %v2057, 1.442695
        %v2079 = vpow.pop %v2078
        %v2080 = vmul.f32 %v2058, 1.442695
        %v2081 = vpow.pop %v2080
        %v2082 = vmul.f32 %v2059, 1.442695
        %v2083 = vpow.pop %v2082
        %v2084 = vmul.f32 %v2060, 1.442695
        %v2085 = vpow.pop %v2084
        %v2086 = vmul.f32 %v2061, 1.442695
        %v2087 = vpow.pop %v2086
        %v2088 = vmul.f32 %v2062, 1.442695
        %v2089 = vpow.pop %v2088
        %v2090 = vmul.f32 %v2063, 1.442695
        %v2091 = vpow.pop %v2090
        %v2092 = vmul.f32 %v2064, 1.442695
        %v2093 = vpow.pop %v2092
        %v2094 = vmul.f32 %v2065, 1.442695
        %v2095 = vpow.pop %v2094
        %v2096 = vmul.f32 %v2066, 1.442695
        %v2097 = vpow.pop %v2096
        %v2098 = vmul.f32 %v2067, 1.442695
        %v2099 = vpow.pop %v2098
        %v2100 = vadd.f32 %v2069, %v2071
        %v2101 = vadd.f32 %v2100, %v2073
        %v2102 = vadd.f32 %v2101, %v2075
        %v2103 = vadd.f32 %v2102, %v2077
        %v2104 = vadd.f32 %v2103, %v2079
        %v2105 = vadd.f32 %v2104, %v2081
        %v2106 = vadd.f32 %v2105, %v2083
        %v2107 = vadd.f32 %v2106, %v2085
        %v2108 = vadd.f32 %v2107, %v2087
        %v2109 = vadd.f32 %v2108, %v2089
        %v2110 = vadd.f32 %v2109, %v2091
        %v2111 = vadd.f32 %v2110, %v2093
        %v2112 = vadd.f32 %v2111, %v2095
        %v2113 = vadd.f32 %v2112, %v2097
        %v2114 = vadd.f32 %v2113, %v2099
        %v2115 = vrot.slane %v2114, 4
        %v2116 = vadd.f32 %v2114, %v2115
        %v2117 = vrot.slane %v2116, 2
        %v2118 = vadd.f32 %v2116, %v2117
        %v2119 = vrot.slane %v2118, 1
        %v2120 = vadd.f32 %v2118, %v2119
        %v2121 = vrcp.pop %v2120
        %2122 = vst [vmem:[%s365] sm:$0x1] %v2121
        %s2123 = sand.u32 %s230, 1
        %s2124 = scalar_lea.sflag [#allocation3], %s2123
        %s2125 = sand.u32 %s230, 1
        %s2126 = smul.addr %s2125, 128
        %s2127 = scalar_lea.vmem [#allocation2], %s2126
        %s2128 = sand.u32 %s256, 1
        %s2129 = scalar_lea.sflag [#allocation5], %s2128
        %s2130 = sand.u32 %s256, 1
        %s2131 = scalar_lea.vmem [#allocation4], %s2130
        // Predicated region
        $region57: #{tpu_custom_call.1} parent=55 // pred_check
          %p2132 = pneg %p240
        $region58: #{tpu_custom_call.1} parent=55 // pred_check_branch
          %2134 = sbr.rel (%p2132) target = $region60
        $region59: #{tpu_custom_call.1} parent=55 // pred_region
          %s2135 = smul.u32 16, %s28
          %s2137 = ssub.s32 2048, 2048
          %2138 = vsyncadd %s2124, %s2137
          %s2139 = smul.addr %s2135, 128
          %s2140 = scalar_lea.hbm %s9, %s2139
          %s2141 = sshll.u32 %s2127, 4
          %s2142 = int_to_ptr.vmem [resolvable:$true] %s2141
          %2147 = dma.vmem_to_hbm [thread:$0]  %s2142, 2048, %s2140, %s2124, 128, 128, 8
        $region60: #{tpu_custom_call.1} parent=55 // pred_fallthru
          _
        // Predicated region
        $region61: #{tpu_custom_call.1} parent=55 // pred_check
          %p2148 = pneg %p266
        $region62: #{tpu_custom_call.1} parent=55 // pred_check_branch
          %2150 = sbr.rel (%p2148) target = $region64
        $region63: #{tpu_custom_call.1} parent=55 // pred_region
          %s2152 = ssub.s32 16, 16
          %2153 = vsyncadd %s2129, %s2152
          %s2154 = smul.addr %s28, 16
          %s2155 = scalar_lea.hbm %s10, %s2154
          %s2157 = sshll.u32 %s2131, 4
          %s2158 = int_to_ptr.vmem [resolvable:$true] %s2157
          %2160 = dma.vmem_to_hbm [thread:$0]  %s2158, 16, %s2155, %s2129
        $region64: #{tpu_custom_call.1} parent=55 // pred_fallthru
          _
      $region56: #{tpu_custom_call.1} parent=5 // pred_fallthru
        _
      %p2161 = scmp.le.s32.totalorder 2, %s23
      // Predicated region
      $region65: #{tpu_custom_call.1} parent=5 // pred_check
        %p2162 = pneg %p2161
      $region66: #{tpu_custom_call.1} parent=5 // pred_check_branch
        %2164 = sbr.rel (%p2162) target = $region68
      $region67: #{tpu_custom_call.1} parent=5 // pred_region
        %s2165 = ssub.s32 %s23, 2
        // Predicated region
        $region69: #{tpu_custom_call.1} parent=67 // pred_check
          %p2166 = pneg %p246
        $region70: #{tpu_custom_call.1} parent=67 // pred_check_branch
          %2168 = sbr.rel (%p2166) target = $region72
        $region71: #{tpu_custom_call.1} parent=67 // pred_region
          %s2169 = sand.u32 %s231, 1
          %s2170 = scalar_lea.sflag [#allocation3], %s2169
          %s2171 = sand.u32 %s231, 1
          %s2172 = smul.addr %s2171, 128
          %s2173 = scalar_lea.vmem [#allocation2], %s2172
          %2174 = dma.done %s2170, 2048
        $region72: #{tpu_custom_call.1} parent=67 // pred_fallthru
          _
        // Predicated region
        $region73: #{tpu_custom_call.1} parent=67 // pred_check
          %p2175 = pneg %p272
        $region74: #{tpu_custom_call.1} parent=67 // pred_check_branch
          %2177 = sbr.rel (%p2175) target = $region76
        $region75: #{tpu_custom_call.1} parent=67 // pred_region
          %s2178 = sand.u32 %s257, 1
          %s2179 = scalar_lea.sflag [#allocation5], %s2178
          %s2180 = sand.u32 %s257, 1
          %s2181 = scalar_lea.vmem [#allocation4], %s2180
          %2182 = dma.done %s2179, 16
        $region76: #{tpu_custom_call.1} parent=67 // pred_fallthru
          _
      $region68: #{tpu_custom_call.1} parent=5 // pred_fallthru
        _
    $region6: #{tpu_custom_call.1} parent=1 // loop_footer
      %s27 = sadd.s32 1, %s23
    $region7: #{tpu_custom_call.1} parent=1 // loop_footer_branch
      %22 = sbr.rel target = $region3
    $region8: #{tpu_custom_call.1} parent=1 // loop_exit
      _
    %2183 = vsyncpa [#allocation3], 1
    %s2184 = scalar_lea.sflag [#allocation3], 1
    %2185 = vsyncpa %s2184, 1
    %2186 = vsyncpa [#allocation5], 1
    %s2187 = scalar_lea.sflag [#allocation5], 1
    %2188 = vsyncpa %s2187, 1

</llo_original>
